<compile_context>
chip_gen: v6e
topology: v6e:2x2x1
jax: 0.10.0
libtpu: 0.0.40
codegen_flags: <defaults>
</compile_context>

<pallas_src>
import functools

import numpy as np

import jax
import jax.numpy as jnp
from jax import lax
from jax.experimental import pallas as pl
from jax.experimental.pallas import tpu as pltpu

_BN_EPS = 1e-5
_NEG_SLOPE = 0.01          # F.leaky_relu default
_K = 5                     # conv kernel size
_P = 2                     # conv padding


# --------------------------------------------------------------------------- #
# Kernel
# --------------------------------------------------------------------------- #
def _make_encoder_kernel(N, dim, c_enc):
    C1, C2, C3 = 3, 8, 16
    H1 = W1 = dim
    H2 = W2 = dim // 2
    H3 = W3 = dim // 4
    R1, R2, R3 = H1 + 2 * _P, H2 + 2 * _P, H3 + 2 * _P       # padded rows / image
    M1, M2, M3 = N * R1 - 2 * _P, N * R2 - 2 * _P, N * R3 - 2 * _P
    assert (W1 & (W1 - 1)) == 0 and (W2 & (W2 - 1)) == 0, "dim must be a power of 2"

    def conv5_slab(xp_ref, wb_ref, m_rows):
        """Batched 5x5 conv for ALL images at once: 5 row-shifted bf16 slab
        matmuls (one per kernel row kh), accumulated in f32."""
        acc = None
        for kh in range(_K):
            part = jnp.dot(xp_ref[kh:kh + m_rows, :], wb_ref[kh],
                           preferred_element_type=jnp.float32)
            acc = part if acc is None else acc + part
        return acc            # [m_rows, W*Cout]; rows at image boundaries are junk

    def channel_allreduce(v, c, w):
        """v: [1, w*c] f32 (lane = w_pos*c + ch).  Returns per-channel sums,
        already replicated across all w positions, via log2(w) lane rolls."""
        t = v
        shift = c
        while shift < w * c:
            t = t + pltpu.roll(t, shift, axis=1)
            shift *= 2
        return t

    def kernel(x_ref,
               wb1_ref, g1_ref, be1_ref, ee1_ref,
               wb2_ref, g2_ref, be2_ref, ee2_ref,
               wb3_ref, b3_ref,
               o_ref,
               xp1_ref, xp2_ref, xp3_ref, y_ref):
        # Zero the padded activation slabs ONCE: their borders are the conv zero
        # padding; the interiors are fully overwritten below.
        xp1_ref[...] = jnp.zeros(xp1_ref.shape, xp1_ref.dtype)
        xp2_ref[...] = jnp.zeros(xp2_ref.shape, xp2_ref.dtype)
        xp3_ref[...] = jnp.zeros(xp3_ref.shape, xp3_ref.dtype)

        # Stage the (already bf16) input into the layer-1 padded slab.
        for n in range(N):
            xp1_ref[n * R1 + _P: n * R1 + _P + H1,
                    _P * C1: _P * C1 + W1 * C1] = x_ref[n * H1:(n + 1) * H1, :]

        def conv_bn_act_pool(xp_ref, wb_ref, g_ref, be_ref, ee_ref,
                             r_img, hc, wc, cc, hn, wn, xpn_ref, rn_img, m_rows):
            # ---- conv: 5 batched slab matmuls (no per-image matmul loop).
            # Conv bias omitted: batch-stat BN cancels a per-channel bias exactly.
            y_ref[0:m_rows, :] = conv5_slab(xp_ref, wb_ref, m_rows)

            # ---- BatchNorm batch statistics (f32; junk boundary rows excluded).
            cnt = float(N * hc * wc)
            colsum = jnp.zeros((1, wc * cc), jnp.float32)
            for n in range(N):
                r0 = n * r_img
                colsum = colsum + jnp.sum(y_ref[r0:r0 + hc, :], axis=0, keepdims=True)
            mean_w = channel_allreduce(colsum, cc, wc) / cnt

            sqsum = jnp.zeros((1, wc * cc), jnp.float32)
            for n in range(N):
                r0 = n * r_img
                d = y_ref[r0:r0 + hc, :] - mean_w
                sqsum = sqsum + jnp.sum(d * d, axis=0, keepdims=True)
            var_w = channel_allreduce(sqsum, cc, wc) / cnt       # biased variance
            scale_w = g_ref[...] * lax.rsqrt(var_w + _BN_EPS)
            shift_w = be_ref[...] - scale_w * mean_w

            # ---- normalize + leaky_relu (in place), then 2x2 maxpool.
            # NOTE(small N): Python loops are fine here; use lax.fori_loop if N grows.
            cmaxes = []
            for n in range(N):
                r0 = n * r_img
                z = y_ref[r0:r0 + hc, :] * scale_w + shift_w
                z = jnp.where(z > 0, z, _NEG_SLOPE * z)
                y_ref[r0:r0 + hc, :] = z
                # Row pairs: exact f32 strided loads + VPU max (no selection matmul).
                ev = y_ref[pl.ds(r0, hn, stride=2), :]
                od = y_ref[pl.ds(r0 + 1, hn, stride=2), :]
                rmax = jnp.maximum(ev, od)
                # Column pairs: XLU lane roll by one channel block + VPU max.
                cmaxes.append(jnp.maximum(
                    rmax, pltpu.roll(rmax, wc * cc - cc, axis=1)))
            # Lane compaction (keep even-w columns): ONE bf16 selection matmul for
            # the whole batch; the result feeds the bf16 conv slab of the next
            # layer, so this adds no precision loss beyond the bf16 staging.
            cmax_all = cmaxes[0] if N == 1 else jnp.concatenate(cmaxes, axis=0)
            pooled_all = jnp.dot(cmax_all.astype(jnp.bfloat16), ee_ref[...],
                                 preferred_element_type=jnp.float32)
            for n in range(N):
                xpn_ref[n * rn_img + _P: n * rn_img + _P + hn,
                        _P * cc: _P * cc + wn * cc] = (
                    pooled_all[n * hn:(n + 1) * hn, :].astype(xpn_ref.dtype))

        conv_bn_act_pool(xp1_ref, wb1_ref, g1_ref, be1_ref, ee1_ref,
                         R1, H1, W1, C2, H2, W2, xp2_ref, R2, M1)
        conv_bn_act_pool(xp2_ref, wb2_ref, g2_ref, be2_ref, ee2_ref,
                         R2, H2, W2, C3, H3, W3, xp3_ref, R3, M2)

        # ---- layer 3: conv + bias + exact sigmoid, batched over images.
        acc3 = conv5_slab(xp3_ref, wb3_ref, M3) + b3_ref[...]
        o_ref[...] = 1.0 / (1.0 + jnp.exp(-acc3))   # exact; junk rows sliced off outside

    return kernel


# --------------------------------------------------------------------------- #
# pallas_call builder (grid-less, whole-array VMEM operands, no double buffering)
# --------------------------------------------------------------------------- #
def _build_encoder_call(N, dim, c_enc):
    C1, C2, C3 = 3, 8, 16
    W1, W2, W3 = dim, dim // 2, dim // 4
    R1, R2, R3 = dim + 4, dim // 2 + 4, dim // 4 + 4
    M3 = N * R3 - 4

    kernel = _make_encoder_kernel(N, dim, c_enc)
    vmem = pl.BlockSpec(memory_space=pltpu.MemorySpace.VMEM)

    # Single reused f32 conv-output scratch: lane width dim*8 == W1*C2 == W2*C3.
    return pl.pallas_call(
        kernel,
        out_shape=jax.ShapeDtypeStruct((M3, W3 * c_enc), jnp.float32),
        in_specs=[vmem] * 11,
        out_specs=vmem,
        scratch_shapes=[
            pltpu.VMEM((N * R1, (W1 + 4) * C1), jnp.bfloat16),   # padded input slab
            pltpu.VMEM((N * R2, (W2 + 4) * C2), jnp.bfloat16),   # padded layer-2 slab
            pltpu.VMEM((N * R3, (W3 + 4) * C3), jnp.bfloat16),   # padded layer-3 slab
            pltpu.VMEM((N * R1 - 4, dim * 8), jnp.float32),      # conv-out / BN scratch
        ],
        compiler_params=pltpu.CompilerParams(vmem_limit_bytes=32 * 1024 * 1024),
    )


# --------------------------------------------------------------------------- #
# Parameter preparation (host-side numpy) — layout plumbing, not compute
# --------------------------------------------------------------------------- #
def _banded_conv_weight(wt, w_out):
    """PyTorch conv weight [Cout, Cin, 5, 5] -> [5, (w_out+4)*Cin, w_out*Cout]
    banded slabs so that  y[:, w*Cout+co] = sum_kh  Xpad[kh:kh+H, :] @ wb[kh]."""
    cout, cin, nkh, nkw = wt.shape
    wb = np.zeros((nkh, (w_out + nkw - 1) * cin, w_out * cout), np.float32)
    for kh in range(nkh):
        for kw in range(nkw):
            blk = wt[:, :, kh, kw].T                     # [Cin, Cout]
            for w in range(w_out):
                r = (w + kw) * cin
                c = w * cout
                wb[kh, r:r + cin, c:c + cout] = blk
    return wb


def _col_pool_even_selector(w, c):
    """0/1 selector [w*c, (w//2)*c] keeping the even-w channel blocks."""
    ee = np.zeros((w * c, (w // 2) * c), np.float32)
    for j in range(w // 2):
        for ch in range(c):
            ee[(2 * j) * c + ch, j * c + ch] = 1.0
    return ee


def init_params(key, encoding_channels):
    ks = jax.random.split(key, 8)

    def conv_w(k, cin, cout):
        fan_in = cin * _K * _K
        return jax.random.normal(k, (cout, cin, _K, _K), jnp.float32) / np.sqrt(fan_in)

    p = {}
    p["w1"] = conv_w(ks[0], 3, 8)
    p["g1"] = 1.0 + 0.1 * jax.random.normal(ks[1], (8,), jnp.float32)
    p["be1"] = 0.1 * jax.random.normal(ks[2], (8,), jnp.float32)
    p["w2"] = conv_w(ks[3], 8, 16)
    p["g2"] = 1.0 + 0.1 * jax.random.normal(ks[4], (16,), jnp.float32)
    p["be2"] = 0.1 * jax.random.normal(ks[5], (16,), jnp.float32)
    p["w3"] = conv_w(ks[6], 16, encoding_channels)
    p["b3"] = 0.1 * jax.random.normal(ks[7], (encoding_channels,), jnp.float32)
    # conv1/conv2 biases intentionally omitted: training-mode (batch-stat)
    # BatchNorm cancels a per-channel constant bias exactly.
    return p


def pack_params(params, dim, encoding_channels):
    C2, C3 = 8, 16
    W1, W2, W3 = dim, dim // 2, dim // 4

    w1, w2, w3 = (np.asarray(params[k]) for k in ("w1", "w2", "w3"))
    g1, be1 = np.asarray(params["g1"]), np.asarray(params["be1"])
    g2, be2 = np.asarray(params["g2"]), np.asarray(params["be2"])
    b3 = np.asarray(params["b3"])

    return [
        jnp.asarray(_banded_conv_weight(w1, W1), jnp.bfloat16),
        jnp.asarray(np.tile(g1, W1)[None, :], jnp.float32),
        jnp.asarray(np.tile(be1, W1)[None, :], jnp.float32),
        jnp.asarray(_col_pool_even_selector(W1, C2), jnp.bfloat16),
        jnp.asarray(_banded_conv_weight(w2, W2), jnp.bfloat16),
        jnp.asarray(np.tile(g2, W2)[None, :], jnp.float32),
        jnp.asarray(np.tile(be2, W2)[None, :], jnp.float32),
        jnp.asarray(_col_pool_even_selector(W2, C3), jnp.bfloat16),
        jnp.asarray(_banded_conv_weight(w3, W3), jnp.bfloat16),
        jnp.asarray(np.tile(b3, W3)[None, :], jnp.float32),
    ]


# --------------------------------------------------------------------------- #
# Forward
# --------------------------------------------------------------------------- #
@functools.partial(jax.jit, static_argnums=(2, 3))
def encoder_forward(x_nchw, packed, dim, encoding_channels):
    N = x_nchw.shape[0]
    H3 = W3 = dim // 4
    R3 = H3 + 4
    # NCHW -> NHWC -> one 2-D slab [N*H, W*C] (channel fastest along lanes), bf16.
    x = jnp.transpose(x_nchw, (0, 2, 3, 1)).reshape(N * dim, dim * 3).astype(jnp.bfloat16)
    call = _build_encoder_call(N, dim, encoding_channels)
    slab = call(x, *packed)                               # [N*(H3+4)-4, W3*Cenc]
    rows = [slab[n * R3:n * R3 + H3] for n in range(N)]   # drop junk boundary rows
    out = jnp.stack(rows, axis=0).reshape(N, H3, W3, encoding_channels)
    return jnp.transpose(out, (0, 3, 1, 2))               # NCHW


# --------------------------------------------------------------------------- #
if __name__ == "__main__":
    ENCODING_CHANNELS = 4
    DIM = 16          # input spatial size; output spatial = DIM // 4
    N = 2

    key = jax.random.PRNGKey(0)
    k_x, k_p = jax.random.split(key)
    x = jax.random.normal(k_x, (N, 3, DIM, DIM), jnp.float32)   # NCHW like PyTorch

    params = init_params(k_p, ENCODING_CHANNELS)
    packed = pack_params(params, DIM, ENCODING_CHANNELS)

    out = encoder_forward(x, packed, DIM, ENCODING_CHANNELS)
    out = jax.block_until_ready(out)

    assert out.shape == (N, ENCODING_CHANNELS, DIM // 4, DIM // 4), out.shape
    assert bool(jnp.all(jnp.isfinite(out))), "non-finite values in encoder output"
    assert bool(jnp.all((out >= 0.0) & (out <= 1.0))), "sigmoid output out of range"
    print("KERNEL_OK")
</pallas_src>

<mosaic_0001>
module attributes {stable_mosaic.version = 11 : i64} {
  func.func @kernel(%arg0: memref<32x48xbf16, #tpu.memory_space<vmem>>, %arg1: memref<5x60x128xbf16, #tpu.memory_space<vmem>>, %arg2: memref<1x128xf32, #tpu.memory_space<vmem>>, %arg3: memref<1x128xf32, #tpu.memory_space<vmem>>, %arg4: memref<128x64xbf16, #tpu.memory_space<vmem>>, %arg5: memref<5x96x128xbf16, #tpu.memory_space<vmem>>, %arg6: memref<1x128xf32, #tpu.memory_space<vmem>>, %arg7: memref<1x128xf32, #tpu.memory_space<vmem>>, %arg8: memref<128x64xbf16, #tpu.memory_space<vmem>>, %arg9: memref<5x128x16xbf16, #tpu.memory_space<vmem>>, %arg10: memref<1x16xf32, #tpu.memory_space<vmem>>, %arg11: memref<12x16xf32, #tpu.memory_space<vmem>>, %arg12: memref<40x60xbf16, #tpu.memory_space<vmem>>, %arg13: memref<24x96xbf16, #tpu.memory_space<vmem>>, %arg14: memref<16x128xbf16, #tpu.memory_space<vmem>>, %arg15: memref<36x128xf32, #tpu.memory_space<vmem>>) attributes {dimension_semantics = [], scalar_prefetch = 0 : i64, scratch_operands = 4 : i64, tpu.core_type = #tpu.core_type<tc>} {
    %cst = arith.constant 0.000000e+00 : bf16
    %0 = vector.broadcast %cst : bf16 to vector<40x60xbf16>
    %c0 = arith.constant 0 : index
    %c0_0 = arith.constant 0 : index
    %1 = vector.load %arg12[%c0, %c0_0] : memref<40x60xbf16, #tpu.memory_space<vmem>>, vector<40x60xbf16>
    tpu.vector_store %arg12[%c0, %c0_0], %0 {strides = array<i32>} : memref<40x60xbf16, #tpu.memory_space<vmem>>, vector<40x60xbf16>,
    %cst_1 = arith.constant 0.000000e+00 : bf16
    %2 = vector.broadcast %cst_1 : bf16 to vector<24x96xbf16>
    %c0_2 = arith.constant 0 : index
    %c0_3 = arith.constant 0 : index
    %3 = vector.load %arg13[%c0_2, %c0_3] : memref<24x96xbf16, #tpu.memory_space<vmem>>, vector<24x96xbf16>
    tpu.vector_store %arg13[%c0_2, %c0_3], %2 {strides = array<i32>} : memref<24x96xbf16, #tpu.memory_space<vmem>>, vector<24x96xbf16>,
    %cst_4 = arith.constant 0.000000e+00 : bf16
    %4 = vector.broadcast %cst_4 : bf16 to vector<16x128xbf16>
    %c0_5 = arith.constant 0 : index
    %c0_6 = arith.constant 0 : index
    %5 = vector.load %arg14[%c0_5, %c0_6] : memref<16x128xbf16, #tpu.memory_space<vmem>>, vector<16x128xbf16>
    tpu.vector_store %arg14[%c0_5, %c0_6], %4 {strides = array<i32>} : memref<16x128xbf16, #tpu.memory_space<vmem>>, vector<16x128xbf16>,
    %c0_7 = arith.constant 0 : index
    %c0_8 = arith.constant 0 : index
    %6 = vector.load %arg0[%c0_7, %c0_8] : memref<32x48xbf16, #tpu.memory_space<vmem>>, vector<16x48xbf16>
    %c2 = arith.constant 2 : index
    %c6 = arith.constant 6 : index
    %7 = vector.load %arg12[%c2, %c6] : memref<40x60xbf16, #tpu.memory_space<vmem>>, vector<16x48xbf16>
    tpu.vector_store %arg12[%c2, %c6], %6 {strides = array<i32>} : memref<40x60xbf16, #tpu.memory_space<vmem>>, vector<16x48xbf16>,
    %c16 = arith.constant 16 : index
    %c0_9 = arith.constant 0 : index
    %8 = vector.load %arg0[%c16, %c0_9] : memref<32x48xbf16, #tpu.memory_space<vmem>>, vector<16x48xbf16>
    %c22 = arith.constant 22 : index
    %c6_10 = arith.constant 6 : index
    %9 = vector.load %arg12[%c22, %c6_10] : memref<40x60xbf16, #tpu.memory_space<vmem>>, vector<16x48xbf16>
    tpu.vector_store %arg12[%c22, %c6_10], %8 {strides = array<i32>} : memref<40x60xbf16, #tpu.memory_space<vmem>>, vector<16x48xbf16>,
    %c0_11 = arith.constant 0 : index
    %c0_12 = arith.constant 0 : index
    %10 = vector.load %arg12[%c0_11, %c0_12] : memref<40x60xbf16, #tpu.memory_space<vmem>>, vector<36x60xbf16>
    %c0_13 = arith.constant 0 : index
    %c0_14 = arith.constant 0 : index
    %c0_15 = arith.constant 0 : index
    %11 = vector.load %arg1[%c0_13, %c0_14, %c0_15] : memref<5x60x128xbf16, #tpu.memory_space<vmem>>, vector<1x60x128xbf16>
    %12 = vector.shape_cast %11 : vector<1x60x128xbf16> to vector<60x128xbf16>
    %cst_16 = arith.constant dense<0.000000e+00> : vector<36x128xf32>
    %13 = tpu.matmul %10, %12, %cst_16 {dimension_numbers = #tpu.dot_dimension_numbers<[1], [0], [0], [1], [0, 0, 1, 1], [], []>} : vector<36x60xbf16>, vector<60x128xbf16>, vector<36x128xf32> -> vector<36x128xf32>
    %c1 = arith.constant 1 : index
    %c0_17 = arith.constant 0 : index
    %14 = vector.load %arg12[%c1, %c0_17] : memref<40x60xbf16, #tpu.memory_space<vmem>>, vector<36x60xbf16>
    %c1_18 = arith.constant 1 : index
    %c0_19 = arith.constant 0 : index
    %c0_20 = arith.constant 0 : index
    %15 = vector.load %arg1[%c1_18, %c0_19, %c0_20] : memref<5x60x128xbf16, #tpu.memory_space<vmem>>, vector<1x60x128xbf16>
    %16 = vector.shape_cast %15 : vector<1x60x128xbf16> to vector<60x128xbf16>
    %cst_21 = arith.constant dense<0.000000e+00> : vector<36x128xf32>
    %17 = tpu.matmul %14, %16, %cst_21 {dimension_numbers = #tpu.dot_dimension_numbers<[1], [0], [0], [1], [0, 0, 1, 1], [], []>} : vector<36x60xbf16>, vector<60x128xbf16>, vector<36x128xf32> -> vector<36x128xf32>
    %18 = arith.addf %13, %17 : vector<36x128xf32>
    %c2_22 = arith.constant 2 : index
    %c0_23 = arith.constant 0 : index
    %19 = vector.load %arg12[%c2_22, %c0_23] : memref<40x60xbf16, #tpu.memory_space<vmem>>, vector<36x60xbf16>
    %c2_24 = arith.constant 2 : index
    %c0_25 = arith.constant 0 : index
    %c0_26 = arith.constant 0 : index
    %20 = vector.load %arg1[%c2_24, %c0_25, %c0_26] : memref<5x60x128xbf16, #tpu.memory_space<vmem>>, vector<1x60x128xbf16>
    %21 = vector.shape_cast %20 : vector<1x60x128xbf16> to vector<60x128xbf16>
    %cst_27 = arith.constant dense<0.000000e+00> : vector<36x128xf32>
    %22 = tpu.matmul %19, %21, %cst_27 {dimension_numbers = #tpu.dot_dimension_numbers<[1], [0], [0], [1], [0, 0, 1, 1], [], []>} : vector<36x60xbf16>, vector<60x128xbf16>, vector<36x128xf32> -> vector<36x128xf32>
    %23 = arith.addf %18, %22 : vector<36x128xf32>
    %c3 = arith.constant 3 : index
    %c0_28 = arith.constant 0 : index
    %24 = vector.load %arg12[%c3, %c0_28] : memref<40x60xbf16, #tpu.memory_space<vmem>>, vector<36x60xbf16>
    %c3_29 = arith.constant 3 : index
    %c0_30 = arith.constant 0 : index
    %c0_31 = arith.constant 0 : index
    %25 = vector.load %arg1[%c3_29, %c0_30, %c0_31] : memref<5x60x128xbf16, #tpu.memory_space<vmem>>, vector<1x60x128xbf16>
    %26 = vector.shape_cast %25 : vector<1x60x128xbf16> to vector<60x128xbf16>
    %cst_32 = arith.constant dense<0.000000e+00> : vector<36x128xf32>
    %27 = tpu.matmul %24, %26, %cst_32 {dimension_numbers = #tpu.dot_dimension_numbers<[1], [0], [0], [1], [0, 0, 1, 1], [], []>} : vector<36x60xbf16>, vector<60x128xbf16>, vector<36x128xf32> -> vector<36x128xf32>
    %28 = arith.addf %23, %27 : vector<36x128xf32>
    %c4 = arith.constant 4 : index
    %c0_33 = arith.constant 0 : index
    %29 = vector.load %arg12[%c4, %c0_33] : memref<40x60xbf16, #tpu.memory_space<vmem>>, vector<36x60xbf16>
    %c4_34 = arith.constant 4 : index
    %c0_35 = arith.constant 0 : index
    %c0_36 = arith.constant 0 : index
    %30 = vector.load %arg1[%c4_34, %c0_35, %c0_36] : memref<5x60x128xbf16, #tpu.memory_space<vmem>>, vector<1x60x128xbf16>
    %31 = vector.shape_cast %30 : vector<1x60x128xbf16> to vector<60x128xbf16>
    %cst_37 = arith.constant dense<0.000000e+00> : vector<36x128xf32>
    %32 = tpu.matmul %29, %31, %cst_37 {dimension_numbers = #tpu.dot_dimension_numbers<[1], [0], [0], [1], [0, 0, 1, 1], [], []>} : vector<36x60xbf16>, vector<60x128xbf16>, vector<36x128xf32> -> vector<36x128xf32>
    %33 = arith.addf %28, %32 : vector<36x128xf32>
    %c0_38 = arith.constant 0 : index
    %c0_39 = arith.constant 0 : index
    %34 = vector.load %arg15[%c0_38, %c0_39] : memref<36x128xf32, #tpu.memory_space<vmem>>, vector<36x128xf32>
    tpu.vector_store %arg15[%c0_38, %c0_39], %33 {strides = array<i32>} : memref<36x128xf32, #tpu.memory_space<vmem>>, vector<36x128xf32>,
    %cst_40 = arith.constant 0.000000e+00 : f32
    %35 = vector.broadcast %cst_40 : f32 to vector<1x128xf32>
    %c0_41 = arith.constant 0 : index
    %c0_42 = arith.constant 0 : index
    %36 = vector.load %arg15[%c0_41, %c0_42] : memref<36x128xf32, #tpu.memory_space<vmem>>, vector<16x128xf32>
    %cst_43 = arith.constant dense<0.000000e+00> : vector<128xf32>
    %37 = vector.multi_reduction <add>, %36, %cst_43 [0] : vector<16x128xf32> to vector<128xf32>
    %38 = vector.shape_cast %37 : vector<128xf32> to vector<1x128xf32>
    %39 = arith.addf %35, %38 : vector<1x128xf32>
    %c20 = arith.constant 20 : index
    %c0_44 = arith.constant 0 : index
    %40 = vector.load %arg15[%c20, %c0_44] : memref<36x128xf32, #tpu.memory_space<vmem>>, vector<16x128xf32>
    %cst_45 = arith.constant dense<0.000000e+00> : vector<128xf32>
    %41 = vector.multi_reduction <add>, %40, %cst_45 [0] : vector<16x128xf32> to vector<128xf32>
    %42 = vector.shape_cast %41 : vector<128xf32> to vector<1x128xf32>
    %43 = arith.addf %39, %42 : vector<1x128xf32>
    %c8_i32 = arith.constant 8 : i32
    %44 = tpu.dynamic_rotate %43 by %c8_i32 dim 1 : vector<1x128xf32>, i32 -> vector<1x128xf32>
    %45 = arith.addf %43, %44 : vector<1x128xf32>
    %c16_i32 = arith.constant 16 : i32
    %46 = tpu.dynamic_rotate %45 by %c16_i32 dim 1 : vector<1x128xf32>, i32 -> vector<1x128xf32>
    %47 = arith.addf %45, %46 : vector<1x128xf32>
    %c32_i32 = arith.constant 32 : i32
    %48 = tpu.dynamic_rotate %47 by %c32_i32 dim 1 : vector<1x128xf32>, i32 -> vector<1x128xf32>
    %49 = arith.addf %47, %48 : vector<1x128xf32>
    %c64_i32 = arith.constant 64 : i32
    %50 = tpu.dynamic_rotate %49 by %c64_i32 dim 1 : vector<1x128xf32>, i32 -> vector<1x128xf32>
    %51 = arith.addf %49, %50 : vector<1x128xf32>
    %cst_46 = arith.constant 5.120000e+02 : f32
    %52 = vector.broadcast %cst_46 : f32 to vector<1x128xf32>
    %53 = arith.divf %51, %52 : vector<1x128xf32>
    %cst_47 = arith.constant 0.000000e+00 : f32
    %54 = vector.broadcast %cst_47 : f32 to vector<1x128xf32>
    %c0_48 = arith.constant 0 : index
    %c0_49 = arith.constant 0 : index
    %55 = vector.load %arg15[%c0_48, %c0_49] : memref<36x128xf32, #tpu.memory_space<vmem>>, vector<16x128xf32>
    %56 = vector.broadcast %53 : vector<1x128xf32> to vector<16x128xf32>
    %57 = arith.subf %55, %56 : vector<16x128xf32>
    %58 = arith.mulf %57, %57 : vector<16x128xf32>
    %cst_50 = arith.constant dense<0.000000e+00> : vector<128xf32>
    %59 = vector.multi_reduction <add>, %58, %cst_50 [0] : vector<16x128xf32> to vector<128xf32>
    %60 = vector.shape_cast %59 : vector<128xf32> to vector<1x128xf32>
    %61 = arith.addf %54, %60 : vector<1x128xf32>
    %c20_51 = arith.constant 20 : index
    %c0_52 = arith.constant 0 : index
    %62 = vector.load %arg15[%c20_51, %c0_52] : memref<36x128xf32, #tpu.memory_space<vmem>>, vector<16x128xf32>
    %63 = vector.broadcast %53 : vector<1x128xf32> to vector<16x128xf32>
    %64 = arith.subf %62, %63 : vector<16x128xf32>
    %65 = arith.mulf %64, %64 : vector<16x128xf32>
    %cst_53 = arith.constant dense<0.000000e+00> : vector<128xf32>
    %66 = vector.multi_reduction <add>, %65, %cst_53 [0] : vector<16x128xf32> to vector<128xf32>
    %67 = vector.shape_cast %66 : vector<128xf32> to vector<1x128xf32>
    %68 = arith.addf %61, %67 : vector<1x128xf32>
    %c8_i32_54 = arith.constant 8 : i32
    %69 = tpu.dynamic_rotate %68 by %c8_i32_54 dim 1 : vector<1x128xf32>, i32 -> vector<1x128xf32>
    %70 = arith.addf %68, %69 : vector<1x128xf32>
    %c16_i32_55 = arith.constant 16 : i32
    %71 = tpu.dynamic_rotate %70 by %c16_i32_55 dim 1 : vector<1x128xf32>, i32 -> vector<1x128xf32>
    %72 = arith.addf %70, %71 : vector<1x128xf32>
    %c32_i32_56 = arith.constant 32 : i32
    %73 = tpu.dynamic_rotate %72 by %c32_i32_56 dim 1 : vector<1x128xf32>, i32 -> vector<1x128xf32>
    %74 = arith.addf %72, %73 : vector<1x128xf32>
    %c64_i32_57 = arith.constant 64 : i32
    %75 = tpu.dynamic_rotate %74 by %c64_i32_57 dim 1 : vector<1x128xf32>, i32 -> vector<1x128xf32>
    %76 = arith.addf %74, %75 : vector<1x128xf32>
    %cst_58 = arith.constant 5.120000e+02 : f32
    %77 = vector.broadcast %cst_58 : f32 to vector<1x128xf32>
    %78 = arith.divf %76, %77 : vector<1x128xf32>
    %c0_59 = arith.constant 0 : index
    %c0_60 = arith.constant 0 : index
    %79 = vector.load %arg2[%c0_59, %c0_60] : memref<1x128xf32, #tpu.memory_space<vmem>>, vector<1x128xf32>
    %cst_61 = arith.constant 9.99999974E-6 : f32
    %80 = vector.broadcast %cst_61 : f32 to vector<1x128xf32>
    %81 = arith.addf %78, %80 : vector<1x128xf32>
    %82 = math.rsqrt %81 : vector<1x128xf32>
    %83 = arith.mulf %79, %82 : vector<1x128xf32>
    %c0_62 = arith.constant 0 : index
    %c0_63 = arith.constant 0 : index
    %84 = vector.load %arg3[%c0_62, %c0_63] : memref<1x128xf32, #tpu.memory_space<vmem>>, vector<1x128xf32>
    %85 = arith.mulf %83, %53 : vector<1x128xf32>
    %86 = arith.subf %84, %85 : vector<1x128xf32>
    %c0_64 = arith.constant 0 : index
    %c0_65 = arith.constant 0 : index
    %87 = vector.load %arg15[%c0_64, %c0_65] : memref<36x128xf32, #tpu.memory_space<vmem>>, vector<16x128xf32>
    %88 = vector.broadcast %83 : vector<1x128xf32> to vector<16x128xf32>
    %89 = arith.mulf %87, %88 : vector<16x128xf32>
    %90 = vector.broadcast %86 : vector<1x128xf32> to vector<16x128xf32>
    %91 = arith.addf %89, %90 : vector<16x128xf32>
    %cst_66 = arith.constant 0.000000e+00 : f32
    %92 = vector.broadcast %cst_66 : f32 to vector<16x128xf32>
    %93 = arith.cmpf ogt, %91, %92 : vector<16x128xf32>
    %cst_67 = arith.constant 0.00999999977 : f32
    %94 = vector.broadcast %cst_67 : f32 to vector<16x128xf32>
    %95 = arith.mulf %94, %91 : vector<16x128xf32>
    %96 = arith.select %93, %91, %95 : vector<16x128xi1>, vector<16x128xf32>
    %c0_68 = arith.constant 0 : index
    %c0_69 = arith.constant 0 : index
    %97 = vector.load %arg15[%c0_68, %c0_69] : memref<36x128xf32, #tpu.memory_space<vmem>>, vector<16x128xf32>
    tpu.vector_store %arg15[%c0_68, %c0_69], %96 {strides = array<i32>} : memref<36x128xf32, #tpu.memory_space<vmem>>, vector<16x128xf32>,
    %c0_70 = arith.constant 0 : index
    %c0_71 = arith.constant 0 : index
    %98 = tpu.strided_load %arg15[%c0_70, %c0_71] {strides = array<i32: 2, 1>} : memref<36x128xf32, #tpu.memory_space<vmem>>, vector<8x128xf32>
    %c1_72 = arith.constant 1 : index
    %c0_73 = arith.constant 0 : index
    %99 = tpu.strided_load %arg15[%c1_72, %c0_73] {strides = array<i32: 2, 1>} : memref<36x128xf32, #tpu.memory_space<vmem>>, vector<8x128xf32>
    %100 = arith.maximumf %98, %99 : vector<8x128xf32>
    %c120_i32 = arith.constant 120 : i32
    %101 = tpu.dynamic_rotate %100 by %c120_i32 dim 1 : vector<8x128xf32>, i32 -> vector<8x128xf32>
    %102 = arith.maximumf %100, %101 : vector<8x128xf32>
    %c20_74 = arith.constant 20 : index
    %c0_75 = arith.constant 0 : index
    %103 = vector.load %arg15[%c20_74, %c0_75] : memref<36x128xf32, #tpu.memory_space<vmem>>, vector<16x128xf32>
    %104 = vector.broadcast %83 : vector<1x128xf32> to vector<16x128xf32>
    %105 = arith.mulf %103, %104 : vector<16x128xf32>
    %106 = vector.broadcast %86 : vector<1x128xf32> to vector<16x128xf32>
    %107 = arith.addf %105, %106 : vector<16x128xf32>
    %cst_76 = arith.constant 0.000000e+00 : f32
    %108 = vector.broadcast %cst_76 : f32 to vector<16x128xf32>
    %109 = arith.cmpf ogt, %107, %108 : vector<16x128xf32>
    %cst_77 = arith.constant 0.00999999977 : f32
    %110 = vector.broadcast %cst_77 : f32 to vector<16x128xf32>
    %111 = arith.mulf %110, %107 : vector<16x128xf32>
    %112 = arith.select %109, %107, %111 : vector<16x128xi1>, vector<16x128xf32>
    %c20_78 = arith.constant 20 : index
    %c0_79 = arith.constant 0 : index
    %113 = vector.load %arg15[%c20_78, %c0_79] : memref<36x128xf32, #tpu.memory_space<vmem>>, vector<16x128xf32>
    tpu.vector_store %arg15[%c20_78, %c0_79], %112 {strides = array<i32>} : memref<36x128xf32, #tpu.memory_space<vmem>>, vector<16x128xf32>,
    %c20_80 = arith.constant 20 : index
    %c0_81 = arith.constant 0 : index
    %114 = tpu.strided_load %arg15[%c20_80, %c0_81] {strides = array<i32: 2, 1>} : memref<36x128xf32, #tpu.memory_space<vmem>>, vector<8x128xf32>
    %c21 = arith.constant 21 : index
    %c0_82 = arith.constant 0 : index
    %115 = tpu.strided_load %arg15[%c21, %c0_82] {strides = array<i32: 2, 1>} : memref<36x128xf32, #tpu.memory_space<vmem>>, vector<8x128xf32>
    %116 = arith.maximumf %114, %115 : vector<8x128xf32>
    %c120_i32_83 = arith.constant 120 : i32
    %117 = tpu.dynamic_rotate %116 by %c120_i32_83 dim 1 : vector<8x128xf32>, i32 -> vector<8x128xf32>
    %118 = arith.maximumf %116, %117 : vector<8x128xf32>
    %119 = tpu.concatenate %102, %118 in 0 : vector<8x128xf32>, vector<8x128xf32> -> vector<16x128xf32>
    %120 = arith.truncf %119 : vector<16x128xf32> to vector<16x128xbf16>
    %c0_84 = arith.constant 0 : index
    %c0_85 = arith.constant 0 : index
    %121 = vector.load %arg4[%c0_84, %c0_85] : memref<128x64xbf16, #tpu.memory_space<vmem>>, vector<128x64xbf16>
    %cst_86 = arith.constant dense<0.000000e+00> : vector<16x64xf32>
    %122 = tpu.matmul %120, %121, %cst_86 {dimension_numbers = #tpu.dot_dimension_numbers<[1], [0], [0], [1], [0, 0, 1, 1], [], []>} : vector<16x128xbf16>, vector<128x64xbf16>, vector<16x64xf32> -> vector<16x64xf32>
    %123 = vector.extract_strided_slice %122 {offsets = [0, 0], sizes = [8, 64], strides = [1, 1]} : vector<16x64xf32> to vector<8x64xf32>
    %124 = arith.truncf %123 : vector<8x64xf32> to vector<8x64xbf16>
    %c2_87 = arith.constant 2 : index
    %c16_88 = arith.constant 16 : index
    %125 = vector.load %arg13[%c2_87, %c16_88] : memref<24x96xbf16, #tpu.memory_space<vmem>>, vector<8x64xbf16>
    tpu.vector_store %arg13[%c2_87, %c16_88], %124 {strides = array<i32>} : memref<24x96xbf16, #tpu.memory_space<vmem>>, vector<8x64xbf16>,
    %126 = vector.extract_strided_slice %122 {offsets = [8, 0], sizes = [8, 64], strides = [1, 1]} : vector<16x64xf32> to vector<8x64xf32>
    %127 = arith.truncf %126 : vector<8x64xf32> to vector<8x64xbf16>
    %c14 = arith.constant 14 : index
    %c16_89 = arith.constant 16 : index
    %128 = vector.load %arg13[%c14, %c16_89] : memref<24x96xbf16, #tpu.memory_space<vmem>>, vector<8x64xbf16>
    tpu.vector_store %arg13[%c14, %c16_89], %127 {strides = array<i32>} : memref<24x96xbf16, #tpu.memory_space<vmem>>, vector<8x64xbf16>,
    %c0_90 = arith.constant 0 : index
    %c0_91 = arith.constant 0 : index
    %129 = vector.load %arg13[%c0_90, %c0_91] : memref<24x96xbf16, #tpu.memory_space<vmem>>, vector<20x96xbf16>
    %c0_92 = arith.constant 0 : index
    %c0_93 = arith.constant 0 : index
    %c0_94 = arith.constant 0 : index
    %130 = vector.load %arg5[%c0_92, %c0_93, %c0_94] : memref<5x96x128xbf16, #tpu.memory_space<vmem>>, vector<1x96x128xbf16>
    %131 = vector.shape_cast %130 : vector<1x96x128xbf16> to vector<96x128xbf16>
    %cst_95 = arith.constant dense<0.000000e+00> : vector<20x128xf32>
    %132 = tpu.matmul %129, %131, %cst_95 {dimension_numbers = #tpu.dot_dimension_numbers<[1], [0], [0], [1], [0, 0, 1, 1], [], []>} : vector<20x96xbf16>, vector<96x128xbf16>, vector<20x128xf32> -> vector<20x128xf32>
    %c1_96 = arith.constant 1 : index
    %c0_97 = arith.constant 0 : index
    %133 = vector.load %arg13[%c1_96, %c0_97] : memref<24x96xbf16, #tpu.memory_space<vmem>>, vector<20x96xbf16>
    %c1_98 = arith.constant 1 : index
    %c0_99 = arith.constant 0 : index
    %c0_100 = arith.constant 0 : index
    %134 = vector.load %arg5[%c1_98, %c0_99, %c0_100] : memref<5x96x128xbf16, #tpu.memory_space<vmem>>, vector<1x96x128xbf16>
    %135 = vector.shape_cast %134 : vector<1x96x128xbf16> to vector<96x128xbf16>
    %cst_101 = arith.constant dense<0.000000e+00> : vector<20x128xf32>
    %136 = tpu.matmul %133, %135, %cst_101 {dimension_numbers = #tpu.dot_dimension_numbers<[1], [0], [0], [1], [0, 0, 1, 1], [], []>} : vector<20x96xbf16>, vector<96x128xbf16>, vector<20x128xf32> -> vector<20x128xf32>
    %137 = arith.addf %132, %136 : vector<20x128xf32>
    %c2_102 = arith.constant 2 : index
    %c0_103 = arith.constant 0 : index
    %138 = vector.load %arg13[%c2_102, %c0_103] : memref<24x96xbf16, #tpu.memory_space<vmem>>, vector<20x96xbf16>
    %c2_104 = arith.constant 2 : index
    %c0_105 = arith.constant 0 : index
    %c0_106 = arith.constant 0 : index
    %139 = vector.load %arg5[%c2_104, %c0_105, %c0_106] : memref<5x96x128xbf16, #tpu.memory_space<vmem>>, vector<1x96x128xbf16>
    %140 = vector.shape_cast %139 : vector<1x96x128xbf16> to vector<96x128xbf16>
    %cst_107 = arith.constant dense<0.000000e+00> : vector<20x128xf32>
    %141 = tpu.matmul %138, %140, %cst_107 {dimension_numbers = #tpu.dot_dimension_numbers<[1], [0], [0], [1], [0, 0, 1, 1], [], []>} : vector<20x96xbf16>, vector<96x128xbf16>, vector<20x128xf32> -> vector<20x128xf32>
    %142 = arith.addf %137, %141 : vector<20x128xf32>
    %c3_108 = arith.constant 3 : index
    %c0_109 = arith.constant 0 : index
    %143 = vector.load %arg13[%c3_108, %c0_109] : memref<24x96xbf16, #tpu.memory_space<vmem>>, vector<20x96xbf16>
    %c3_110 = arith.constant 3 : index
    %c0_111 = arith.constant 0 : index
    %c0_112 = arith.constant 0 : index
    %144 = vector.load %arg5[%c3_110, %c0_111, %c0_112] : memref<5x96x128xbf16, #tpu.memory_space<vmem>>, vector<1x96x128xbf16>
    %145 = vector.shape_cast %144 : vector<1x96x128xbf16> to vector<96x128xbf16>
    %cst_113 = arith.constant dense<0.000000e+00> : vector<20x128xf32>
    %146 = tpu.matmul %143, %145, %cst_113 {dimension_numbers = #tpu.dot_dimension_numbers<[1], [0], [0], [1], [0, 0, 1, 1], [], []>} : vector<20x96xbf16>, vector<96x128xbf16>, vector<20x128xf32> -> vector<20x128xf32>
    %147 = arith.addf %142, %146 : vector<20x128xf32>
    %c4_114 = arith.constant 4 : index
    %c0_115 = arith.constant 0 : index
    %148 = vector.load %arg13[%c4_114, %c0_115] : memref<24x96xbf16, #tpu.memory_space<vmem>>, vector<20x96xbf16>
    %c4_116 = arith.constant 4 : index
    %c0_117 = arith.constant 0 : index
    %c0_118 = arith.constant 0 : index
    %149 = vector.load %arg5[%c4_116, %c0_117, %c0_118] : memref<5x96x128xbf16, #tpu.memory_space<vmem>>, vector<1x96x128xbf16>
    %150 = vector.shape_cast %149 : vector<1x96x128xbf16> to vector<96x128xbf16>
    %cst_119 = arith.constant dense<0.000000e+00> : vector<20x128xf32>
    %151 = tpu.matmul %148, %150, %cst_119 {dimension_numbers = #tpu.dot_dimension_numbers<[1], [0], [0], [1], [0, 0, 1, 1], [], []>} : vector<20x96xbf16>, vector<96x128xbf16>, vector<20x128xf32> -> vector<20x128xf32>
    %152 = arith.addf %147, %151 : vector<20x128xf32>
    %c0_120 = arith.constant 0 : index
    %c0_121 = arith.constant 0 : index
    %153 = vector.load %arg15[%c0_120, %c0_121] : memref<36x128xf32, #tpu.memory_space<vmem>>, vector<20x128xf32>
    tpu.vector_store %arg15[%c0_120, %c0_121], %152 {strides = array<i32>} : memref<36x128xf32, #tpu.memory_space<vmem>>, vector<20x128xf32>,
    %cst_122 = arith.constant 0.000000e+00 : f32
    %154 = vector.broadcast %cst_122 : f32 to vector<1x128xf32>
    %c0_123 = arith.constant 0 : index
    %c0_124 = arith.constant 0 : index
    %155 = vector.load %arg15[%c0_123, %c0_124] : memref<36x128xf32, #tpu.memory_space<vmem>>, vector<8x128xf32>
    %cst_125 = arith.constant dense<0.000000e+00> : vector<128xf32>
    %156 = vector.multi_reduction <add>, %155, %cst_125 [0] : vector<8x128xf32> to vector<128xf32>
    %157 = vector.shape_cast %156 : vector<128xf32> to vector<1x128xf32>
    %158 = arith.addf %154, %157 : vector<1x128xf32>
    %c12 = arith.constant 12 : index
    %c0_126 = arith.constant 0 : index
    %159 = vector.load %arg15[%c12, %c0_126] : memref<36x128xf32, #tpu.memory_space<vmem>>, vector<8x128xf32>
    %cst_127 = arith.constant dense<0.000000e+00> : vector<128xf32>
    %160 = vector.multi_reduction <add>, %159, %cst_127 [0] : vector<8x128xf32> to vector<128xf32>
    %161 = vector.shape_cast %160 : vector<128xf32> to vector<1x128xf32>
    %162 = arith.addf %158, %161 : vector<1x128xf32>
    %c16_i32_128 = arith.constant 16 : i32
    %163 = tpu.dynamic_rotate %162 by %c16_i32_128 dim 1 : vector<1x128xf32>, i32 -> vector<1x128xf32>
    %164 = arith.addf %162, %163 : vector<1x128xf32>
    %c32_i32_129 = arith.constant 32 : i32
    %165 = tpu.dynamic_rotate %164 by %c32_i32_129 dim 1 : vector<1x128xf32>, i32 -> vector<1x128xf32>
    %166 = arith.addf %164, %165 : vector<1x128xf32>
    %c64_i32_130 = arith.constant 64 : i32
    %167 = tpu.dynamic_rotate %166 by %c64_i32_130 dim 1 : vector<1x128xf32>, i32 -> vector<1x128xf32>
    %168 = arith.addf %166, %167 : vector<1x128xf32>
    %cst_131 = arith.constant 1.280000e+02 : f32
    %169 = vector.broadcast %cst_131 : f32 to vector<1x128xf32>
    %170 = arith.divf %168, %169 : vector<1x128xf32>
    %cst_132 = arith.constant 0.000000e+00 : f32
    %171 = vector.broadcast %cst_132 : f32 to vector<1x128xf32>
    %c0_133 = arith.constant 0 : index
    %c0_134 = arith.constant 0 : index
    %172 = vector.load %arg15[%c0_133, %c0_134] : memref<36x128xf32, #tpu.memory_space<vmem>>, vector<8x128xf32>
    %173 = vector.broadcast %170 : vector<1x128xf32> to vector<8x128xf32>
    %174 = arith.subf %172, %173 : vector<8x128xf32>
    %175 = arith.mulf %174, %174 : vector<8x128xf32>
    %cst_135 = arith.constant dense<0.000000e+00> : vector<128xf32>
    %176 = vector.multi_reduction <add>, %175, %cst_135 [0] : vector<8x128xf32> to vector<128xf32>
    %177 = vector.shape_cast %176 : vector<128xf32> to vector<1x128xf32>
    %178 = arith.addf %171, %177 : vector<1x128xf32>
    %c12_136 = arith.constant 12 : index
    %c0_137 = arith.constant 0 : index
    %179 = vector.load %arg15[%c12_136, %c0_137] : memref<36x128xf32, #tpu.memory_space<vmem>>, vector<8x128xf32>
    %180 = vector.broadcast %170 : vector<1x128xf32> to vector<8x128xf32>
    %181 = arith.subf %179, %180 : vector<8x128xf32>
    %182 = arith.mulf %181, %181 : vector<8x128xf32>
    %cst_138 = arith.constant dense<0.000000e+00> : vector<128xf32>
    %183 = vector.multi_reduction <add>, %182, %cst_138 [0] : vector<8x128xf32> to vector<128xf32>
    %184 = vector.shape_cast %183 : vector<128xf32> to vector<1x128xf32>
    %185 = arith.addf %178, %184 : vector<1x128xf32>
    %c16_i32_139 = arith.constant 16 : i32
    %186 = tpu.dynamic_rotate %185 by %c16_i32_139 dim 1 : vector<1x128xf32>, i32 -> vector<1x128xf32>
    %187 = arith.addf %185, %186 : vector<1x128xf32>
    %c32_i32_140 = arith.constant 32 : i32
    %188 = tpu.dynamic_rotate %187 by %c32_i32_140 dim 1 : vector<1x128xf32>, i32 -> vector<1x128xf32>
    %189 = arith.addf %187, %188 : vector<1x128xf32>
    %c64_i32_141 = arith.constant 64 : i32
    %190 = tpu.dynamic_rotate %189 by %c64_i32_141 dim 1 : vector<1x128xf32>, i32 -> vector<1x128xf32>
    %191 = arith.addf %189, %190 : vector<1x128xf32>
    %cst_142 = arith.constant 1.280000e+02 : f32
    %192 = vector.broadcast %cst_142 : f32 to vector<1x128xf32>
    %193 = arith.divf %191, %192 : vector<1x128xf32>
    %c0_143 = arith.constant 0 : index
    %c0_144 = arith.constant 0 : index
    %194 = vector.load %arg6[%c0_143, %c0_144] : memref<1x128xf32, #tpu.memory_space<vmem>>, vector<1x128xf32>
    %cst_145 = arith.constant 9.99999974E-6 : f32
    %195 = vector.broadcast %cst_145 : f32 to vector<1x128xf32>
    %196 = arith.addf %193, %195 : vector<1x128xf32>
    %197 = math.rsqrt %196 : vector<1x128xf32>
    %198 = arith.mulf %194, %197 : vector<1x128xf32>
    %c0_146 = arith.constant 0 : index
    %c0_147 = arith.constant 0 : index
    %199 = vector.load %arg7[%c0_146, %c0_147] : memref<1x128xf32, #tpu.memory_space<vmem>>, vector<1x128xf32>
    %200 = arith.mulf %198, %170 : vector<1x128xf32>
    %201 = arith.subf %199, %200 : vector<1x128xf32>
    %c0_148 = arith.constant 0 : index
    %c0_149 = arith.constant 0 : index
    %202 = vector.load %arg15[%c0_148, %c0_149] : memref<36x128xf32, #tpu.memory_space<vmem>>, vector<8x128xf32>
    %203 = vector.broadcast %198 : vector<1x128xf32> to vector<8x128xf32>
    %204 = arith.mulf %202, %203 : vector<8x128xf32>
    %205 = vector.broadcast %201 : vector<1x128xf32> to vector<8x128xf32>
    %206 = arith.addf %204, %205 : vector<8x128xf32>
    %cst_150 = arith.constant 0.000000e+00 : f32
    %207 = vector.broadcast %cst_150 : f32 to vector<8x128xf32>
    %208 = arith.cmpf ogt, %206, %207 : vector<8x128xf32>
    %cst_151 = arith.constant 0.00999999977 : f32
    %209 = vector.broadcast %cst_151 : f32 to vector<8x128xf32>
    %210 = arith.mulf %209, %206 : vector<8x128xf32>
    %211 = arith.select %208, %206, %210 : vector<8x128xi1>, vector<8x128xf32>
    %c0_152 = arith.constant 0 : index
    %c0_153 = arith.constant 0 : index
    %212 = vector.load %arg15[%c0_152, %c0_153] : memref<36x128xf32, #tpu.memory_space<vmem>>, vector<8x128xf32>
    tpu.vector_store %arg15[%c0_152, %c0_153], %211 {strides = array<i32>} : memref<36x128xf32, #tpu.memory_space<vmem>>, vector<8x128xf32>,
    %c0_154 = arith.constant 0 : index
    %c0_155 = arith.constant 0 : index
    %213 = tpu.strided_load %arg15[%c0_154, %c0_155] {strides = array<i32: 2, 1>} : memref<36x128xf32, #tpu.memory_space<vmem>>, vector<4x128xf32>
    %c1_156 = arith.constant 1 : index
    %c0_157 = arith.constant 0 : index
    %214 = tpu.strided_load %arg15[%c1_156, %c0_157] {strides = array<i32: 2, 1>} : memref<36x128xf32, #tpu.memory_space<vmem>>, vector<4x128xf32>
    %215 = arith.maximumf %213, %214 : vector<4x128xf32>
    %c112_i32 = arith.constant 112 : i32
    %216 = tpu.dynamic_rotate %215 by %c112_i32 dim 1 : vector<4x128xf32>, i32 -> vector<4x128xf32>
    %217 = arith.maximumf %215, %216 : vector<4x128xf32>
    %c12_158 = arith.constant 12 : index
    %c0_159 = arith.constant 0 : index
    %218 = vector.load %arg15[%c12_158, %c0_159] : memref<36x128xf32, #tpu.memory_space<vmem>>, vector<8x128xf32>
    %219 = vector.broadcast %198 : vector<1x128xf32> to vector<8x128xf32>
    %220 = arith.mulf %218, %219 : vector<8x128xf32>
    %221 = vector.broadcast %201 : vector<1x128xf32> to vector<8x128xf32>
    %222 = arith.addf %220, %221 : vector<8x128xf32>
    %cst_160 = arith.constant 0.000000e+00 : f32
    %223 = vector.broadcast %cst_160 : f32 to vector<8x128xf32>
    %224 = arith.cmpf ogt, %222, %223 : vector<8x128xf32>
    %cst_161 = arith.constant 0.00999999977 : f32
    %225 = vector.broadcast %cst_161 : f32 to vector<8x128xf32>
    %226 = arith.mulf %225, %222 : vector<8x128xf32>
    %227 = arith.select %224, %222, %226 : vector<8x128xi1>, vector<8x128xf32>
    %c12_162 = arith.constant 12 : index
    %c0_163 = arith.constant 0 : index
    %228 = vector.load %arg15[%c12_162, %c0_163] : memref<36x128xf32, #tpu.memory_space<vmem>>, vector<8x128xf32>
    tpu.vector_store %arg15[%c12_162, %c0_163], %227 {strides = array<i32>} : memref<36x128xf32, #tpu.memory_space<vmem>>, vector<8x128xf32>,
    %c12_164 = arith.constant 12 : index
    %c0_165 = arith.constant 0 : index
    %229 = tpu.strided_load %arg15[%c12_164, %c0_165] {strides = array<i32: 2, 1>} : memref<36x128xf32, #tpu.memory_space<vmem>>, vector<4x128xf32>
    %c13 = arith.constant 13 : index
    %c0_166 = arith.constant 0 : index
    %230 = tpu.strided_load %arg15[%c13, %c0_166] {strides = array<i32: 2, 1>} : memref<36x128xf32, #tpu.memory_space<vmem>>, vector<4x128xf32>
    %231 = arith.maximumf %229, %230 : vector<4x128xf32>
    %c112_i32_167 = arith.constant 112 : i32
    %232 = tpu.dynamic_rotate %231 by %c112_i32_167 dim 1 : vector<4x128xf32>, i32 -> vector<4x128xf32>
    %233 = arith.maximumf %231, %232 : vector<4x128xf32>
    %234 = tpu.concatenate %217, %233 in 0 : vector<4x128xf32>, vector<4x128xf32> -> vector<8x128xf32>
    %235 = arith.truncf %234 : vector<8x128xf32> to vector<8x128xbf16>
    %c0_168 = arith.constant 0 : index
    %c0_169 = arith.constant 0 : index
    %236 = vector.load %arg8[%c0_168, %c0_169] : memref<128x64xbf16, #tpu.memory_space<vmem>>, vector<128x64xbf16>
    %cst_170 = arith.constant dense<0.000000e+00> : vector<8x64xf32>
    %237 = tpu.matmul %235, %236, %cst_170 {dimension_numbers = #tpu.dot_dimension_numbers<[1], [0], [0], [1], [0, 0, 1, 1], [], []>} : vector<8x128xbf16>, vector<128x64xbf16>, vector<8x64xf32> -> vector<8x64xf32>
    %238 = vector.extract_strided_slice %237 {offsets = [0, 0], sizes = [4, 64], strides = [1, 1]} : vector<8x64xf32> to vector<4x64xf32>
    %239 = arith.truncf %238 : vector<4x64xf32> to vector<4x64xbf16>
    %c2_171 = arith.constant 2 : index
    %c32 = arith.constant 32 : index
    %240 = vector.load %arg14[%c2_171, %c32] : memref<16x128xbf16, #tpu.memory_space<vmem>>, vector<4x64xbf16>
    tpu.vector_store %arg14[%c2_171, %c32], %239 {strides = array<i32>} : memref<16x128xbf16, #tpu.memory_space<vmem>>, vector<4x64xbf16>,
    %241 = vector.extract_strided_slice %237 {offsets = [4, 0], sizes = [4, 64], strides = [1, 1]} : vector<8x64xf32> to vector<4x64xf32>
    %242 = arith.truncf %241 : vector<4x64xf32> to vector<4x64xbf16>
    %c10 = arith.constant 10 : index
    %c32_172 = arith.constant 32 : index
    %243 = vector.load %arg14[%c10, %c32_172] : memref<16x128xbf16, #tpu.memory_space<vmem>>, vector<4x64xbf16>
    tpu.vector_store %arg14[%c10, %c32_172], %242 {strides = array<i32>} : memref<16x128xbf16, #tpu.memory_space<vmem>>, vector<4x64xbf16>,
    %c0_173 = arith.constant 0 : index
    %c0_174 = arith.constant 0 : index
    %244 = vector.load %arg14[%c0_173, %c0_174] : memref<16x128xbf16, #tpu.memory_space<vmem>>, vector<12x128xbf16>
    %c0_175 = arith.constant 0 : index
    %c0_176 = arith.constant 0 : index
    %c0_177 = arith.constant 0 : index
    %245 = vector.load %arg9[%c0_175, %c0_176, %c0_177] : memref<5x128x16xbf16, #tpu.memory_space<vmem>>, vector<1x128x16xbf16>
    %246 = vector.shape_cast %245 : vector<1x128x16xbf16> to vector<128x16xbf16>
    %cst_178 = arith.constant dense<0.000000e+00> : vector<12x16xf32>
    %247 = tpu.matmul %244, %246, %cst_178 {dimension_numbers = #tpu.dot_dimension_numbers<[1], [0], [0], [1], [0, 0, 1, 1], [], []>} : vector<12x128xbf16>, vector<128x16xbf16>, vector<12x16xf32> -> vector<12x16xf32>
    %c1_179 = arith.constant 1 : index
    %c0_180 = arith.constant 0 : index
    %248 = vector.load %arg14[%c1_179, %c0_180] : memref<16x128xbf16, #tpu.memory_space<vmem>>, vector<12x128xbf16>
    %c1_181 = arith.constant 1 : index
    %c0_182 = arith.constant 0 : index
    %c0_183 = arith.constant 0 : index
    %249 = vector.load %arg9[%c1_181, %c0_182, %c0_183] : memref<5x128x16xbf16, #tpu.memory_space<vmem>>, vector<1x128x16xbf16>
    %250 = vector.shape_cast %249 : vector<1x128x16xbf16> to vector<128x16xbf16>
    %cst_184 = arith.constant dense<0.000000e+00> : vector<12x16xf32>
    %251 = tpu.matmul %248, %250, %cst_184 {dimension_numbers = #tpu.dot_dimension_numbers<[1], [0], [0], [1], [0, 0, 1, 1], [], []>} : vector<12x128xbf16>, vector<128x16xbf16>, vector<12x16xf32> -> vector<12x16xf32>
    %252 = arith.addf %247, %251 : vector<12x16xf32>
    %c2_185 = arith.constant 2 : index
    %c0_186 = arith.constant 0 : index
    %253 = vector.load %arg14[%c2_185, %c0_186] : memref<16x128xbf16, #tpu.memory_space<vmem>>, vector<12x128xbf16>
    %c2_187 = arith.constant 2 : index
    %c0_188 = arith.constant 0 : index
    %c0_189 = arith.constant 0 : index
    %254 = vector.load %arg9[%c2_187, %c0_188, %c0_189] : memref<5x128x16xbf16, #tpu.memory_space<vmem>>, vector<1x128x16xbf16>
    %255 = vector.shape_cast %254 : vector<1x128x16xbf16> to vector<128x16xbf16>
    %cst_190 = arith.constant dense<0.000000e+00> : vector<12x16xf32>
    %256 = tpu.matmul %253, %255, %cst_190 {dimension_numbers = #tpu.dot_dimension_numbers<[1], [0], [0], [1], [0, 0, 1, 1], [], []>} : vector<12x128xbf16>, vector<128x16xbf16>, vector<12x16xf32> -> vector<12x16xf32>
    %257 = arith.addf %252, %256 : vector<12x16xf32>
    %c3_191 = arith.constant 3 : index
    %c0_192 = arith.constant 0 : index
    %258 = vector.load %arg14[%c3_191, %c0_192] : memref<16x128xbf16, #tpu.memory_space<vmem>>, vector<12x128xbf16>
    %c3_193 = arith.constant 3 : index
    %c0_194 = arith.constant 0 : index
    %c0_195 = arith.constant 0 : index
    %259 = vector.load %arg9[%c3_193, %c0_194, %c0_195] : memref<5x128x16xbf16, #tpu.memory_space<vmem>>, vector<1x128x16xbf16>
    %260 = vector.shape_cast %259 : vector<1x128x16xbf16> to vector<128x16xbf16>
    %cst_196 = arith.constant dense<0.000000e+00> : vector<12x16xf32>
    %261 = tpu.matmul %258, %260, %cst_196 {dimension_numbers = #tpu.dot_dimension_numbers<[1], [0], [0], [1], [0, 0, 1, 1], [], []>} : vector<12x128xbf16>, vector<128x16xbf16>, vector<12x16xf32> -> vector<12x16xf32>
    %262 = arith.addf %257, %261 : vector<12x16xf32>
    %c4_197 = arith.constant 4 : index
    %c0_198 = arith.constant 0 : index
    %263 = vector.load %arg14[%c4_197, %c0_198] : memref<16x128xbf16, #tpu.memory_space<vmem>>, vector<12x128xbf16>
    %c4_199 = arith.constant 4 : index
    %c0_200 = arith.constant 0 : index
    %c0_201 = arith.constant 0 : index
    %264 = vector.load %arg9[%c4_199, %c0_200, %c0_201] : memref<5x128x16xbf16, #tpu.memory_space<vmem>>, vector<1x128x16xbf16>
    %265 = vector.shape_cast %264 : vector<1x128x16xbf16> to vector<128x16xbf16>
    %cst_202 = arith.constant dense<0.000000e+00> : vector<12x16xf32>
    %266 = tpu.matmul %263, %265, %cst_202 {dimension_numbers = #tpu.dot_dimension_numbers<[1], [0], [0], [1], [0, 0, 1, 1], [], []>} : vector<12x128xbf16>, vector<128x16xbf16>, vector<12x16xf32> -> vector<12x16xf32>
    %267 = arith.addf %262, %266 : vector<12x16xf32>
    %c0_203 = arith.constant 0 : index
    %c0_204 = arith.constant 0 : index
    %268 = vector.load %arg10[%c0_203, %c0_204] : memref<1x16xf32, #tpu.memory_space<vmem>>, vector<1x16xf32>
    %269 = vector.broadcast %268 : vector<1x16xf32> to vector<12x16xf32>
    %270 = arith.addf %267, %269 : vector<12x16xf32>
    %cst_205 = arith.constant 0.000000e+00 : f32
    %271 = vector.broadcast %cst_205 : f32 to vector<12x16xf32>
    %272 = arith.subf %271, %270 : vector<12x16xf32>
    %273 = math.exp %272 : vector<12x16xf32>
    %cst_206 = arith.constant 1.000000e+00 : f32
    %274 = vector.broadcast %cst_206 : f32 to vector<12x16xf32>
    %275 = arith.addf %274, %273 : vector<12x16xf32>
    %cst_207 = arith.constant 1.000000e+00 : f32
    %276 = vector.broadcast %cst_207 : f32 to vector<12x16xf32>
    %277 = arith.divf %276, %275 : vector<12x16xf32>
    %c0_208 = arith.constant 0 : index
    %c0_209 = arith.constant 0 : index
    %278 = vector.load %arg11[%c0_208, %c0_209] : memref<12x16xf32, #tpu.memory_space<vmem>>, vector<12x16xf32>
    tpu.vector_store %arg11[%c0_208, %c0_209], %277 {strides = array<i32>} : memref<12x16xf32, #tpu.memory_space<vmem>>, vector<12x16xf32>,
    return
  }
}

</mosaic_0001>

<llo_original>
// kernel: encoder_forward.1
$region0: #{encoder_forward.1}
  #allocation0 [shape = 'u32[]', space=smem, size = 0x4, offset = 0x4, fixed_abs, tag = 'smem constant byte address 0x4 - core index']
  #allocation1 [shape = 'u32[144,128]{1,0:T(1,128)}', space=vmem, size = 0x12000, scoped, tag = 'internal scratch']
  #allocation2 [shape = 'bf16[40,60]{1,0:T(8,128)(2,1)}', space=vmem, size = 0x2800, scoped, tag = 'scratch operand']
  #allocation3 [shape = 'bf16[24,96]{1,0:T(8,128)(2,1)}', space=vmem, size = 0x1800, scoped, tag = 'scratch operand']
  #allocation4 [shape = 'bf16[16,128]{1,0:T(8,128)(2,1)}', space=vmem, size = 0x1000, scoped, tag = 'scratch operand']
  #allocation5 [shape = 'f32[36,128]{1,0:T(8,128)}', space=vmem, size = 0x5000, scoped, tag = 'scratch operand']
  %s0 = inlined_call_operand.vmem [shape: bf16[32,48], index: 0, kind: input, shape index: {}]
  %s1 = inlined_call_operand.vmem [shape: bf16[5,60,128], index: 1, kind: input, shape index: {}]
  %s2 = inlined_call_operand.vmem [shape: f32[1,128], index: 2, kind: input, shape index: {}]
  %s3 = inlined_call_operand.vmem [shape: f32[1,128], index: 3, kind: input, shape index: {}]
  %s4 = inlined_call_operand.vmem [shape: bf16[128,64], index: 4, kind: input, shape index: {}]
  %s5 = inlined_call_operand.vmem [shape: bf16[5,96,128], index: 5, kind: input, shape index: {}]
  %s6 = inlined_call_operand.vmem [shape: f32[1,128], index: 6, kind: input, shape index: {}]
  %s7 = inlined_call_operand.vmem [shape: f32[1,128], index: 7, kind: input, shape index: {}]
  %s8 = inlined_call_operand.vmem [shape: bf16[128,64], index: 8, kind: input, shape index: {}]
  %s9 = inlined_call_operand.vmem [shape: bf16[5,128,16], index: 9, kind: input, shape index: {}]
  %s10 = inlined_call_operand.vmem [shape: f32[1,16], index: 10, kind: input, shape index: {}]
  %s11 = inlined_call_operand.vmem [shape: f32[12,16], index: 11, kind: output, shape index: {}]
  %s12 = sld [smem:[#allocation0]]
  $region54: #{encoder_forward.1} parent=0
    _
  %s14 = ssub.s32 1, %s12
  %s15 = scalar_select 0, %s14, %s12
  // Predicated region
  $region2: #{encoder_forward.1} parent=0 // pred_check
    _
  $region3: #{encoder_forward.1} parent=0 // pred_check_branch
    %17 = sbr.rel (0) target = $region5
  $region4: #{encoder_forward.1} parent=0 // pred_region
    _
  $region5: #{encoder_forward.1} parent=0 // pred_fallthru
    _
  // Predicated region
  $region6: #{encoder_forward.1} parent=0 // pred_check
    _
  $region7: #{encoder_forward.1} parent=0 // pred_check_branch
    %19 = sbr.rel (0) target = $region9
  $region8: #{encoder_forward.1} parent=0 // pred_region
    _
  $region9: #{encoder_forward.1} parent=0 // pred_fallthru
    _
  // Predicated region
  $region10: #{encoder_forward.1} parent=0 // pred_check
    _
  $region11: #{encoder_forward.1} parent=0 // pred_check_branch
    %21 = sbr.rel (0) target = $region13
  $region12: #{encoder_forward.1} parent=0 // pred_region
    _
  $region13: #{encoder_forward.1} parent=0 // pred_fallthru
    _
  // Predicated region
  $region14: #{encoder_forward.1} parent=0 // pred_check
    _
  $region15: #{encoder_forward.1} parent=0 // pred_check_branch
    %23 = sbr.rel (0) target = $region17
  $region16: #{encoder_forward.1} parent=0 // pred_region
    _
  $region17: #{encoder_forward.1} parent=0 // pred_fallthru
    _
  // Predicated region
  $region18: #{encoder_forward.1} parent=0 // pred_check
    _
  $region19: #{encoder_forward.1} parent=0 // pred_check_branch
    %25 = sbr.rel (0) target = $region21
  $region20: #{encoder_forward.1} parent=0 // pred_region
    _
  $region21: #{encoder_forward.1} parent=0 // pred_fallthru
    _
  // Predicated region
  $region22: #{encoder_forward.1} parent=0 // pred_check
    _
  $region23: #{encoder_forward.1} parent=0 // pred_check_branch
    %27 = sbr.rel (0) target = $region25
  $region24: #{encoder_forward.1} parent=0 // pred_region
    _
  $region25: #{encoder_forward.1} parent=0 // pred_fallthru
    _
  // Predicated region
  $region26: #{encoder_forward.1} parent=0 // pred_check
    _
  $region27: #{encoder_forward.1} parent=0 // pred_check_branch
    %29 = sbr.rel (0) target = $region29
  $region28: #{encoder_forward.1} parent=0 // pred_region
    _
  $region29: #{encoder_forward.1} parent=0 // pred_fallthru
    _
  // Predicated region
  $region30: #{encoder_forward.1} parent=0 // pred_check
    _
  $region31: #{encoder_forward.1} parent=0 // pred_check_branch
    %31 = sbr.rel (0) target = $region33
  $region32: #{encoder_forward.1} parent=0 // pred_region
    _
  $region33: #{encoder_forward.1} parent=0 // pred_fallthru
    _
  // Predicated region
  $region34: #{encoder_forward.1} parent=0 // pred_check
    _
  $region35: #{encoder_forward.1} parent=0 // pred_check_branch
    %33 = sbr.rel (0) target = $region37
  $region36: #{encoder_forward.1} parent=0 // pred_region
    _
  $region37: #{encoder_forward.1} parent=0 // pred_fallthru
    _
  // Predicated region
  $region38: #{encoder_forward.1} parent=0 // pred_check
    _
  $region39: #{encoder_forward.1} parent=0 // pred_check_branch
    %35 = sbr.rel (0) target = $region41
  $region40: #{encoder_forward.1} parent=0 // pred_region
    _
  $region41: #{encoder_forward.1} parent=0 // pred_fallthru
    _
  // Predicated region
  $region42: #{encoder_forward.1} parent=0 // pred_check
    _
  $region43: #{encoder_forward.1} parent=0 // pred_check_branch
    %37 = sbr.rel (0) target = $region45
  $region44: #{encoder_forward.1} parent=0 // pred_region
    _
  $region45: #{encoder_forward.1} parent=0 // pred_fallthru
    _
  %vm39 = vcmask 486400
  %40 = vst.msk [vmem:[#allocation2] sm:$0xf] %vm39, 0
  %41 = vst.msk [vmem:[#allocation2 + $0x4] sm:$0xf] %vm39, 0
  %42 = vst.msk [vmem:[#allocation2 + $0x8] sm:$0xf] %vm39, 0
  %43 = vst.msk [vmem:[#allocation2 + $0xc] sm:$0xf] %vm39, 0
  %44 = vst.msk [vmem:[#allocation2 + $0x10] sm:$0xf] %vm39, 0
  %vm45 = vcmask 781312
  %46 = vst.msk [vmem:[#allocation3] sm:$0xf] %vm45, 0
  %47 = vst.msk [vmem:[#allocation3 + $0x4] sm:$0xf] %vm45, 0
  %48 = vst.msk [vmem:[#allocation3 + $0x8] sm:$0xf] %vm45, 0
  %49 = vst [vmem:[#allocation4] sm:$0xf] 0
  %50 = vst [vmem:[#allocation4 + $0x4] sm:$0xf] 0
  %v51 = vld [vmem:[%s0] sm:$0xf]
  %v52 = vld [vmem:[%s0 + $0x4] sm:$0xf]
  %vm55 = vcmask 1040384
  %vm56 = vcmask 1044484
  %vm57 = vmor %vm55, %vm56
  %v58 = vrot.slane %v51, 7
  %v59 = vrot.slane %v58, 4
  %v60 = vrot.slane %v52, 7
  %v61 = vsel %vm57, %v59, %v60
  %v62 = vrot.slane %v60, 4
  %63 = vrot.lane.b32.xlu0 %v58, 6
  %v64 = vpop.permute.xlu0 %63
  %65 = vrot.lane.b32.xlu0 %v61, 6
  %v66 = vpop.permute.xlu0 %65
  %67 = vrot.lane.b32.xlu0 %v62, 6
  %v68 = vpop.permute.xlu0 %67
  %vm72 = vcmask 437297
  %73 = vst.msk [vmem:[#allocation2] sm:$0xe] %vm72, %v64
  %vm74 = vcmask 437296
  %75 = vst.msk [vmem:[#allocation2 + $0x4] sm:$0xf] %vm74, %v66
  %vm76 = vcmask 434224
  %77 = vst.msk [vmem:[#allocation2 + $0x8] sm:$0x1] %vm76, %v68
  %v78 = vld [vmem:[%s0 + $0x8] sm:$0xf]
  %v79 = vld [vmem:[%s0 + $0xc] sm:$0xf]
  %vm82 = vcmask 1042432
  %vm83 = vcmask 1046532
  %vm84 = vmor %vm82, %vm83
  %v85 = vrot.slane %v78, 5
  %v86 = vrot.slane %v85, 4
  %v87 = vrot.slane %v79, 5
  %v88 = vsel %vm84, %v86, %v87
  %v89 = vrot.slane %v87, 4
  %90 = vrot.lane.b32.xlu0 %v85, 6
  %v91 = vpop.permute.xlu0 %90
  %92 = vrot.lane.b32.xlu0 %v88, 6
  %v93 = vpop.permute.xlu0 %92
  %94 = vrot.lane.b32.xlu0 %v89, 6
  %v95 = vpop.permute.xlu0 %94
  %vm99 = vcmask 437299
  %100 = vst.msk [vmem:[#allocation2 + $0x8] sm:$0x8] %vm99, %v91
  %101 = vst.msk [vmem:[#allocation2 + $0xc] sm:$0xf] %vm74, %v93
  %vm102 = vcmask 436272
  %103 = vst.msk [vmem:[#allocation2 + $0x10] sm:$0x7] %vm102, %v95
  %v104 = vld [vmem:[#allocation2] sm:$0xf]
  %v105 = vld [vmem:[#allocation2 + $0x4] sm:$0xf]
  %v106 = vld [vmem:[#allocation2 + $0x8] sm:$0xf]
  %v107 = vld [vmem:[#allocation2 + $0xc] sm:$0xf]
  %v108 = vld [vmem:[#allocation2 + $0x10] sm:$0x3]
  %v109 = vld [vmem:[%s1] sm:$0xf]
  %v110 = vld [vmem:[%s1 + $0x4] sm:$0xf]
  %v111 = vld [vmem:[%s1 + $0x8] sm:$0xf]
  %v112 = vld [vmem:[%s1 + $0xc] sm:$0xf]
  %v113 = vld [vmem:[%s1 + $0x10] sm:$0xf]
  %v114 = vld [vmem:[%s1 + $0x14] sm:$0xf]
  %v115 = vld [vmem:[%s1 + $0x18] sm:$0xf]
  %v116 = vld [vmem:[%s1 + $0x1c] sm:$0x3]
  %v117 = vld [vmem:[#allocation2 + $0x10] sm:$0x7]
  %s118 = scalar_lea.vmem %s1, 32
  %v119 = vld [vmem:[%s118] sm:$0xf]
  %v120 = vld [vmem:[%s118 + $0x4] sm:$0xf]
  %v121 = vld [vmem:[%s118 + $0x8] sm:$0xf]
  %v122 = vld [vmem:[%s118 + $0xc] sm:$0xf]
  %v123 = vld [vmem:[%s118 + $0x10] sm:$0xf]
  %v124 = vld [vmem:[%s118 + $0x14] sm:$0xf]
  %v125 = vld [vmem:[%s118 + $0x18] sm:$0xf]
  %v126 = vld [vmem:[%s118 + $0x1c] sm:$0x3]
  %v132 = vunpack.c.l.b16 %v104
  %v133 = vunpack.c.l.b16 %v105
  %v134 = vunpack.c.l.b16 %v106
  %v135 = vunpack.c.l.b16 %v107
  %v136 = vunpack.c.l.b16 %v117
  %v137 = vpack.c.b16 %v133, %v132
  %v138 = vpack.c.b16 %v135, %v134
  %v139 = vpack.c.b16 %v136, %v136
  %vm140 = vsmask.f32 7424
  %v142 = vshrl.u32 %v137, 16
  %v144 = vshll.u32 %v137, 16
  %v146 = vrot.slane %v144, 1
  %v147 = vor.u32 %v142, %v146
  %v149 = vshll.u32 %v138, 16
  %v151 = vrot.slane %v149, 1
  %v152 = vsel %vm140, %v147, %v151
  %v153 = vshrl.u32 %v138, 16
  %v155 = vor.u32 %v153, %v151
  %v157 = vshll.u32 %v139, 16
  %v159 = vrot.slane %v157, 1
  %v160 = vsel %vm140, %v155, %v159
  %v161 = vshrl.u32 %v139, 16
  %v163 = vor.u32 %v161, %v159
  %v172 = vunpack.c.l.b16 %v119
  %v173 = vunpack.c.l.b16 %v120
  %v174 = vunpack.c.l.b16 %v121
  %v175 = vunpack.c.l.b16 %v122
  %v176 = vunpack.c.l.b16 %v123
  %v177 = vunpack.c.l.b16 %v124
  %v178 = vunpack.c.l.b16 %v125
  %v179 = vunpack.c.l.b16 %v126
  %v180 = vpack.c.b16 %v173, %v172
  %v181 = vpack.c.b16 %v175, %v174
  %v182 = vpack.c.b16 %v177, %v176
  %v183 = vpack.c.b16 %v179, %v178
  %vm187 = vcmask 490496
  %v189 = vsel %vm187, %v152, 0
  %v192 = vsel %vm187, %v160, 0
  %v195 = vsel %vm187, %v163, 0
  %vm197 = vcmask 1045504
  %v199 = vsel %vm197, %v183, 0
  %201 = vmatprep.subr.bf16.mxu0 0
  %202 = vmatpush1.bf16.msra.mxu0 0
  %203 = vmatprep.subr.bf16.mxu0 0
  %204 = vmatpush1.bf16.msra.mxu0 0
  %205 = vmatprep.subr.bf16.mxu0 0
  %206 = vmatpush1.bf16.msra.mxu0 0
  %207 = vmatprep.subr.bf16.mxu0 0
  %208 = vmatpush1.bf16.msra.mxu0 0
  %209 = vmatprep.subr.bf16.mxu0 0
  %210 = vmatpush1.bf16.msra.mxu0 %v199
  %211 = vmatprep.subr.bf16.mxu0 0
  %212 = vmatpush1.bf16.msra.mxu0 %v182
  %213 = vmatprep.subr.bf16.mxu0 0
  %214 = vmatpush1.bf16.msra.mxu0 %v181
  %215 = vmatprep.subr.bf16.mxu0 0
  %216 = vmatpush1.bf16.msra.mxu0 %v180
  %217 = vmatprep.subr.bf16.mxu0 0
  %218 = vmatpush2.bf16.msra.mxu0 0
  %219 = vmatprep.subr.bf16.mxu0 0
  %220 = vmatpush2.bf16.msra.mxu0 0
  %221 = vmatprep.subr.bf16.mxu0 0
  %222 = vmatpush2.bf16.msra.mxu0 0
  %223 = vmatprep.subr.bf16.mxu0 0
  %224 = vmatpush2.bf16.msra.mxu0 0
  %225 = vmatprep.subr.bf16.mxu0 0
  %226 = vmatpush2.bf16.msra.mxu0 0
  %227 = vmatprep.subr.bf16.mxu0 0
  %228 = vmatpush2.bf16.msra.mxu0 0
  %229 = vmatprep.subr.bf16.mxu0 0
  %230 = vmatpush2.bf16.msra.mxu0 0
  %231 = vmatprep.subr.bf16.mxu0 0
  %232 = vmatpush2.bf16.msra.mxu0 0
  %233 = vmatprep.mubr.bf16.mxu0 0
  %234 = vmatmul.mubr.bf16.gmra.mxu0 %v189
  %v235 = vpop.f32.mrf.mxu0
  %v236 = vadd.f32 0.0, %v235
  %v237 = vpop.f32.mrf.mxu0
  %v238 = vpop.f32.mrf.mxu0
  %v239 = vadd.f32 0.0, %v238
  %v240 = vpop.f32.mrf.mxu0
  %241 = vmatprep.mubr.bf16.mxu0 0
  %242 = vmatmul.mubr.bf16.gmra.mxu0 %v192
  %v243 = vpop.f32.mrf.mxu0
  %v244 = vadd.f32 0.0, %v243
  %v245 = vpop.f32.mrf.mxu0
  %v246 = vpop.f32.mrf.mxu0
  %v247 = vadd.f32 0.0, %v246
  %v248 = vpop.f32.mrf.mxu0
  %249 = vmatprep.mubr.bf16.mxu0 0
  %250 = vmatmul.mubr.bf16.gmra.mxu0 %v195
  %v251 = vpop.f32.mrf.mxu0
  %v252 = vadd.f32 0.0, %v251
  %v253 = vpop.f32.mrf.mxu0
  %v254 = vpop.f32.mrf.mxu0
  %v255 = vpop.f32.mrf.mxu0
  %256 = vdwg.mxu0
  %v258 = vunpack.c.l.b16 %v108
  %v259 = vpack.c.b16 %v258, %v258
  %v268 = vunpack.c.l.b16 %v109
  %v269 = vunpack.c.l.b16 %v110
  %v270 = vunpack.c.l.b16 %v111
  %v271 = vunpack.c.l.b16 %v112
  %v272 = vunpack.c.l.b16 %v113
  %v273 = vunpack.c.l.b16 %v114
  %v274 = vunpack.c.l.b16 %v115
  %v275 = vunpack.c.l.b16 %v116
  %v276 = vpack.c.b16 %v269, %v268
  %v277 = vpack.c.b16 %v271, %v270
  %v278 = vpack.c.b16 %v273, %v272
  %v279 = vpack.c.b16 %v275, %v274
  %v283 = vsel %vm187, %v137, 0
  %v285 = vsel %vm187, %v138, 0
  %v288 = vsel %vm187, %v259, 0
  %v291 = vsel %vm197, %v279, 0
  %293 = vmatprep.subr.bf16.mxu0 0
  %294 = vmatpush1.bf16.msra.mxu0 0
  %295 = vmatprep.subr.bf16.mxu0 0
  %296 = vmatpush1.bf16.msra.mxu0 0
  %297 = vmatprep.subr.bf16.mxu0 0
  %298 = vmatpush1.bf16.msra.mxu0 0
  %299 = vmatprep.subr.bf16.mxu0 0
  %300 = vmatpush1.bf16.msra.mxu0 0
  %301 = vmatprep.subr.bf16.mxu0 0
  %302 = vmatpush1.bf16.msra.mxu0 %v291
  %303 = vmatprep.subr.bf16.mxu0 0
  %304 = vmatpush1.bf16.msra.mxu0 %v278
  %305 = vmatprep.subr.bf16.mxu0 0
  %306 = vmatpush1.bf16.msra.mxu0 %v277
  %307 = vmatprep.subr.bf16.mxu0 0
  %308 = vmatpush1.bf16.msra.mxu0 %v276
  %309 = vmatprep.subr.bf16.mxu0 0
  %310 = vmatpush2.bf16.msra.mxu0 0
  %311 = vmatprep.subr.bf16.mxu0 0
  %312 = vmatpush2.bf16.msra.mxu0 0
  %313 = vmatprep.subr.bf16.mxu0 0
  %314 = vmatpush2.bf16.msra.mxu0 0
  %315 = vmatprep.subr.bf16.mxu0 0
  %316 = vmatpush2.bf16.msra.mxu0 0
  %317 = vmatprep.subr.bf16.mxu0 0
  %318 = vmatpush2.bf16.msra.mxu0 0
  %319 = vmatprep.subr.bf16.mxu0 0
  %320 = vmatpush2.bf16.msra.mxu0 0
  %321 = vmatprep.subr.bf16.mxu0 0
  %322 = vmatpush2.bf16.msra.mxu0 0
  %323 = vmatprep.subr.bf16.mxu0 0
  %324 = vmatpush2.bf16.msra.mxu0 0
  %325 = vmatprep.mubr.bf16.mxu0 0
  %326 = vmatmul.mubr.bf16.gmra.mxu0 %v283
  %v327 = vpop.f32.mrf.mxu0
  %v328 = vadd.f32 %v236, %v327
  %v329 = vpop.f32.mrf.mxu0
  %v330 = vpop.f32.mrf.mxu0
  %v331 = vadd.f32 %v239, %v330
  %v332 = vpop.f32.mrf.mxu0
  %333 = vmatprep.mubr.bf16.mxu0 0
  %334 = vmatmul.mubr.bf16.gmra.mxu0 %v285
  %v335 = vpop.f32.mrf.mxu0
  %v336 = vadd.f32 %v244, %v335
  %v337 = vpop.f32.mrf.mxu0
  %v338 = vpop.f32.mrf.mxu0
  %v339 = vadd.f32 %v247, %v338
  %v340 = vpop.f32.mrf.mxu0
  %341 = vmatprep.mubr.bf16.mxu0 0
  %342 = vmatmul.mubr.bf16.gmra.mxu0 %v288
  %v343 = vpop.f32.mrf.mxu0
  %v344 = vadd.f32 %v252, %v343
  %v345 = vpop.f32.mrf.mxu0
  %v346 = vpop.f32.mrf.mxu0
  %v347 = vpop.f32.mrf.mxu0
  %348 = vdwg.mxu0
  %v349 = vld [vmem:[#allocation2] sm:$0xe]
  %s350 = scalar_lea.vmem %s1, 64
  %v351 = vld [vmem:[%s350] sm:$0xf]
  %v352 = vld [vmem:[%s350 + $0x4] sm:$0xf]
  %v353 = vld [vmem:[%s350 + $0x8] sm:$0xf]
  %v354 = vld [vmem:[%s350 + $0xc] sm:$0xf]
  %v355 = vld [vmem:[%s350 + $0x10] sm:$0xf]
  %v356 = vld [vmem:[%s350 + $0x14] sm:$0xf]
  %v357 = vld [vmem:[%s350 + $0x18] sm:$0xf]
  %v358 = vld [vmem:[%s350 + $0x1c] sm:$0x3]
  %v360 = vunpack.c.l.b16 %v349
  %v361 = vpack.c.b16 %v133, %v360
  %vm362 = vcmask 1046528
  %v363 = vrot.slane %v361, 1
  %v364 = vrot.slane %v138, 1
  %v365 = vsel %vm362, %v363, %v364
  %v366 = vrot.slane %v139, 1
  %v367 = vsel %vm362, %v364, %v366
  %v376 = vunpack.c.l.b16 %v351
  %v377 = vunpack.c.l.b16 %v352
  %v378 = vunpack.c.l.b16 %v353
  %v379 = vunpack.c.l.b16 %v354
  %v380 = vunpack.c.l.b16 %v355
  %v381 = vunpack.c.l.b16 %v356
  %v382 = vunpack.c.l.b16 %v357
  %v383 = vunpack.c.l.b16 %v358
  %v384 = vpack.c.b16 %v377, %v376
  %v385 = vpack.c.b16 %v379, %v378
  %v386 = vpack.c.b16 %v381, %v380
  %v387 = vpack.c.b16 %v383, %v382
  %v392 = vsel %vm187, %v365, 0
  %v395 = vsel %vm187, %v367, 0
  %v398 = vsel %vm187, %v366, 0
  %v401 = vsel %vm197, %v387, 0
  %403 = vmatprep.subr.bf16.mxu0 0
  %404 = vmatpush1.bf16.msra.mxu0 0
  %405 = vmatprep.subr.bf16.mxu0 0
  %406 = vmatpush1.bf16.msra.mxu0 0
  %407 = vmatprep.subr.bf16.mxu0 0
  %408 = vmatpush1.bf16.msra.mxu0 0
  %409 = vmatprep.subr.bf16.mxu0 0
  %410 = vmatpush1.bf16.msra.mxu0 0
  %411 = vmatprep.subr.bf16.mxu0 0
  %412 = vmatpush1.bf16.msra.mxu0 %v401
  %413 = vmatprep.subr.bf16.mxu0 0
  %414 = vmatpush1.bf16.msra.mxu0 %v386
  %415 = vmatprep.subr.bf16.mxu0 0
  %416 = vmatpush1.bf16.msra.mxu0 %v385
  %417 = vmatprep.subr.bf16.mxu0 0
  %418 = vmatpush1.bf16.msra.mxu0 %v384
  %419 = vmatprep.subr.bf16.mxu0 0
  %420 = vmatpush2.bf16.msra.mxu0 0
  %421 = vmatprep.subr.bf16.mxu0 0
  %422 = vmatpush2.bf16.msra.mxu0 0
  %423 = vmatprep.subr.bf16.mxu0 0
  %424 = vmatpush2.bf16.msra.mxu0 0
  %425 = vmatprep.subr.bf16.mxu0 0
  %426 = vmatpush2.bf16.msra.mxu0 0
  %427 = vmatprep.subr.bf16.mxu0 0
  %428 = vmatpush2.bf16.msra.mxu0 0
  %429 = vmatprep.subr.bf16.mxu0 0
  %430 = vmatpush2.bf16.msra.mxu0 0
  %431 = vmatprep.subr.bf16.mxu0 0
  %432 = vmatpush2.bf16.msra.mxu0 0
  %433 = vmatprep.subr.bf16.mxu0 0
  %434 = vmatpush2.bf16.msra.mxu0 0
  %435 = vmatprep.mubr.bf16.mxu0 0
  %436 = vmatmul.mubr.bf16.gmra.mxu0 %v392
  %v437 = vpop.f32.mrf.mxu0
  %v438 = vadd.f32 0.0, %v437
  %v439 = vpop.f32.mrf.mxu0
  %v440 = vpop.f32.mrf.mxu0
  %v441 = vadd.f32 0.0, %v440
  %v442 = vpop.f32.mrf.mxu0
  %443 = vmatprep.mubr.bf16.mxu0 0
  %444 = vmatmul.mubr.bf16.gmra.mxu0 %v395
  %v445 = vpop.f32.mrf.mxu0
  %v446 = vadd.f32 0.0, %v445
  %v447 = vpop.f32.mrf.mxu0
  %v448 = vpop.f32.mrf.mxu0
  %v449 = vadd.f32 0.0, %v448
  %v450 = vpop.f32.mrf.mxu0
  %451 = vmatprep.mubr.bf16.mxu0 0
  %452 = vmatmul.mubr.bf16.gmra.mxu0 %v398
  %v453 = vpop.f32.mrf.mxu0
  %v454 = vadd.f32 0.0, %v453
  %v455 = vpop.f32.mrf.mxu0
  %v456 = vpop.f32.mrf.mxu0
  %v457 = vpop.f32.mrf.mxu0
  %458 = vdwg.mxu0
  %v459 = vadd.f32 %v328, %v438
  %v460 = vadd.f32 %v331, %v441
  %v461 = vadd.f32 %v336, %v446
  %v462 = vadd.f32 %v339, %v449
  %v463 = vadd.f32 %v344, %v454
  %v464 = vld [vmem:[#allocation2 + $0x10] sm:$0xf]
  %s465 = scalar_lea.vmem %s1, 96
  %v466 = vld [vmem:[%s465] sm:$0xf]
  %v467 = vld [vmem:[%s465 + $0x4] sm:$0xf]
  %v468 = vld [vmem:[%s465 + $0x8] sm:$0xf]
  %v469 = vld [vmem:[%s465 + $0xc] sm:$0xf]
  %v470 = vld [vmem:[%s465 + $0x10] sm:$0xf]
  %v471 = vld [vmem:[%s465 + $0x14] sm:$0xf]
  %v472 = vld [vmem:[%s465 + $0x18] sm:$0xf]
  %v473 = vld [vmem:[%s465 + $0x1c] sm:$0x3]
  %v475 = vunpack.c.l.b16 %v464
  %v476 = vpack.c.b16 %v475, %v475
  %vm477 = vsmask.f32 6400
  %v479 = vshrl.u32 %v361, 16
  %v481 = vrot.slane %v479, 1
  %v482 = vshll.u32 %v361, 16
  %v484 = vrot.slane %v482, 2
  %v485 = vor.u32 %v481, %v484
  %v486 = vrot.slane %v153, 1
  %v487 = vrot.slane %v149, 2
  %v488 = vor.u32 %v486, %v487
  %v489 = vsel %vm477, %v485, %v488
  %v491 = vshrl.u32 %v476, 16
  %v493 = vrot.slane %v491, 1
  %v494 = vshll.u32 %v476, 16
  %v496 = vrot.slane %v494, 2
  %v497 = vor.u32 %v493, %v496
  %v498 = vsel %vm477, %v488, %v497
  %v507 = vunpack.c.l.b16 %v466
  %v508 = vunpack.c.l.b16 %v467
  %v509 = vunpack.c.l.b16 %v468
  %v510 = vunpack.c.l.b16 %v469
  %v511 = vunpack.c.l.b16 %v470
  %v512 = vunpack.c.l.b16 %v471
  %v513 = vunpack.c.l.b16 %v472
  %v514 = vunpack.c.l.b16 %v473
  %v515 = vpack.c.b16 %v508, %v507
  %v516 = vpack.c.b16 %v510, %v509
  %v517 = vpack.c.b16 %v512, %v511
  %v518 = vpack.c.b16 %v514, %v513
  %v523 = vsel %vm187, %v489, 0
  %v526 = vsel %vm187, %v498, 0
  %v529 = vsel %vm187, %v497, 0
  %v532 = vsel %vm197, %v518, 0
  %534 = vmatprep.subr.bf16.mxu0 0
  %535 = vmatpush1.bf16.msra.mxu0 0
  %536 = vmatprep.subr.bf16.mxu0 0
  %537 = vmatpush1.bf16.msra.mxu0 0
  %538 = vmatprep.subr.bf16.mxu0 0
  %539 = vmatpush1.bf16.msra.mxu0 0
  %540 = vmatprep.subr.bf16.mxu0 0
  %541 = vmatpush1.bf16.msra.mxu0 0
  %542 = vmatprep.subr.bf16.mxu0 0
  %543 = vmatpush1.bf16.msra.mxu0 %v532
  %544 = vmatprep.subr.bf16.mxu0 0
  %545 = vmatpush1.bf16.msra.mxu0 %v517
  %546 = vmatprep.subr.bf16.mxu0 0
  %547 = vmatpush1.bf16.msra.mxu0 %v516
  %548 = vmatprep.subr.bf16.mxu0 0
  %549 = vmatpush1.bf16.msra.mxu0 %v515
  %550 = vmatprep.subr.bf16.mxu0 0
  %551 = vmatpush2.bf16.msra.mxu0 0
  %552 = vmatprep.subr.bf16.mxu0 0
  %553 = vmatpush2.bf16.msra.mxu0 0
  %554 = vmatprep.subr.bf16.mxu0 0
  %555 = vmatpush2.bf16.msra.mxu0 0
  %556 = vmatprep.subr.bf16.mxu0 0
  %557 = vmatpush2.bf16.msra.mxu0 0
  %558 = vmatprep.subr.bf16.mxu0 0
  %559 = vmatpush2.bf16.msra.mxu0 0
  %560 = vmatprep.subr.bf16.mxu0 0
  %561 = vmatpush2.bf16.msra.mxu0 0
  %562 = vmatprep.subr.bf16.mxu0 0
  %563 = vmatpush2.bf16.msra.mxu0 0
  %564 = vmatprep.subr.bf16.mxu0 0
  %565 = vmatpush2.bf16.msra.mxu0 0
  %566 = vmatprep.mubr.bf16.mxu0 0
  %567 = vmatmul.mubr.bf16.gmra.mxu0 %v523
  %v568 = vpop.f32.mrf.mxu0
  %v569 = vadd.f32 0.0, %v568
  %v570 = vpop.f32.mrf.mxu0
  %v571 = vpop.f32.mrf.mxu0
  %v572 = vadd.f32 0.0, %v571
  %v573 = vpop.f32.mrf.mxu0
  %574 = vmatprep.mubr.bf16.mxu0 0
  %575 = vmatmul.mubr.bf16.gmra.mxu0 %v526
  %v576 = vpop.f32.mrf.mxu0
  %v577 = vadd.f32 0.0, %v576
  %v578 = vpop.f32.mrf.mxu0
  %v579 = vpop.f32.mrf.mxu0
  %v580 = vadd.f32 0.0, %v579
  %v581 = vpop.f32.mrf.mxu0
  %582 = vmatprep.mubr.bf16.mxu0 0
  %583 = vmatmul.mubr.bf16.gmra.mxu0 %v529
  %v584 = vpop.f32.mrf.mxu0
  %v585 = vadd.f32 0.0, %v584
  %v586 = vpop.f32.mrf.mxu0
  %v587 = vpop.f32.mrf.mxu0
  %v588 = vpop.f32.mrf.mxu0
  %589 = vdwg.mxu0
  %v590 = vadd.f32 %v459, %v569
  %v591 = vadd.f32 %v460, %v572
  %v592 = vadd.f32 %v461, %v577
  %v593 = vadd.f32 %v462, %v580
  %v594 = vadd.f32 %v463, %v585
  %v595 = vld [vmem:[#allocation2] sm:$0xc]
  %s596 = scalar_lea.vmem %s1, 128
  %v597 = vld [vmem:[%s596] sm:$0xf]
  %v598 = vld [vmem:[%s596 + $0x4] sm:$0xf]
  %v599 = vld [vmem:[%s596 + $0x8] sm:$0xf]
  %v600 = vld [vmem:[%s596 + $0xc] sm:$0xf]
  %v601 = vld [vmem:[%s596 + $0x10] sm:$0xf]
  %v602 = vld [vmem:[%s596 + $0x14] sm:$0xf]
  %v603 = vld [vmem:[%s596 + $0x18] sm:$0xf]
  %v604 = vld [vmem:[%s596 + $0x1c] sm:$0x3]
  %v606 = vunpack.c.l.b16 %v595
  %v607 = vpack.c.b16 %v133, %v606
  %vm608 = vcmask 1045504
  %v609 = vrot.slane %v607, 2
  %v610 = vrot.slane %v138, 2
  %v611 = vsel %vm608, %v609, %v610
  %v612 = vrot.slane %v476, 2
  %v613 = vsel %vm608, %v610, %v612
  %v622 = vunpack.c.l.b16 %v597
  %v623 = vunpack.c.l.b16 %v598
  %v624 = vunpack.c.l.b16 %v599
  %v625 = vunpack.c.l.b16 %v600
  %v626 = vunpack.c.l.b16 %v601
  %v627 = vunpack.c.l.b16 %v602
  %v628 = vunpack.c.l.b16 %v603
  %v629 = vunpack.c.l.b16 %v604
  %v630 = vpack.c.b16 %v623, %v622
  %v631 = vpack.c.b16 %v625, %v624
  %v632 = vpack.c.b16 %v627, %v626
  %v633 = vpack.c.b16 %v629, %v628
  %v638 = vsel %vm187, %v611, 0
  %v641 = vsel %vm187, %v613, 0
  %v644 = vsel %vm187, %v612, 0
  %v647 = vsel %vm197, %v633, 0
  %649 = vmatprep.subr.bf16.mxu0 0
  %650 = vmatpush1.bf16.msra.mxu0 0
  %651 = vmatprep.subr.bf16.mxu0 0
  %652 = vmatpush1.bf16.msra.mxu0 0
  %653 = vmatprep.subr.bf16.mxu0 0
  %654 = vmatpush1.bf16.msra.mxu0 0
  %655 = vmatprep.subr.bf16.mxu0 0
  %656 = vmatpush1.bf16.msra.mxu0 0
  %657 = vmatprep.subr.bf16.mxu0 0
  %658 = vmatpush1.bf16.msra.mxu0 %v647
  %659 = vmatprep.subr.bf16.mxu0 0
  %660 = vmatpush1.bf16.msra.mxu0 %v632
  %661 = vmatprep.subr.bf16.mxu0 0
  %662 = vmatpush1.bf16.msra.mxu0 %v631
  %663 = vmatprep.subr.bf16.mxu0 0
  %664 = vmatpush1.bf16.msra.mxu0 %v630
  %665 = vmatprep.subr.bf16.mxu0 0
  %666 = vmatpush2.bf16.msra.mxu0 0
  %667 = vmatprep.subr.bf16.mxu0 0
  %668 = vmatpush2.bf16.msra.mxu0 0
  %669 = vmatprep.subr.bf16.mxu0 0
  %670 = vmatpush2.bf16.msra.mxu0 0
  %671 = vmatprep.subr.bf16.mxu0 0
  %672 = vmatpush2.bf16.msra.mxu0 0
  %673 = vmatprep.subr.bf16.mxu0 0
  %674 = vmatpush2.bf16.msra.mxu0 0
  %675 = vmatprep.subr.bf16.mxu0 0
  %676 = vmatpush2.bf16.msra.mxu0 0
  %677 = vmatprep.subr.bf16.mxu0 0
  %678 = vmatpush2.bf16.msra.mxu0 0
  %679 = vmatprep.subr.bf16.mxu0 0
  %680 = vmatpush2.bf16.msra.mxu0 0
  %681 = vmatprep.mubr.bf16.mxu0 0
  %682 = vmatmul.mubr.bf16.gmra.mxu0 %v638
  %v683 = vpop.f32.mrf.mxu0
  %v684 = vadd.f32 0.0, %v683
  %v685 = vpop.f32.mrf.mxu0
  %v686 = vpop.f32.mrf.mxu0
  %v687 = vadd.f32 0.0, %v686
  %v688 = vpop.f32.mrf.mxu0
  %689 = vmatprep.mubr.bf16.mxu0 0
  %690 = vmatmul.mubr.bf16.gmra.mxu0 %v641
  %v691 = vpop.f32.mrf.mxu0
  %v692 = vadd.f32 0.0, %v691
  %v693 = vpop.f32.mrf.mxu0
  %v694 = vpop.f32.mrf.mxu0
  %v695 = vadd.f32 0.0, %v694
  %v696 = vpop.f32.mrf.mxu0
  %697 = vmatprep.mubr.bf16.mxu0 0
  %698 = vmatmul.mubr.bf16.gmra.mxu0 %v644
  %v699 = vpop.f32.mrf.mxu0
  %v700 = vadd.f32 0.0, %v699
  %v701 = vpop.f32.mrf.mxu0
  %v702 = vpop.f32.mrf.mxu0
  %v703 = vpop.f32.mrf.mxu0
  %704 = vdwg.mxu0
  %v705 = vadd.f32 %v590, %v684
  %v706 = vadd.f32 %v591, %v687
  %v707 = vadd.f32 %v592, %v692
  %v708 = vadd.f32 %v593, %v695
  %v709 = vadd.f32 %v594, %v700
  %710 = vst [vmem:[#allocation5] sm:$0xff] %v705
  %711 = vst [vmem:[#allocation5 + $0x8] sm:$0xff] %v706
  %712 = vst [vmem:[#allocation5 + $0x10] sm:$0xff] %v707
  %713 = vst [vmem:[#allocation5 + $0x18] sm:$0xff] %v708
  %714 = vst [vmem:[#allocation5 + $0x20] sm:$0xf] %v709
  %v715 = vld [vmem:[#allocation5] sm:$0xff]
  %v716 = vld [vmem:[#allocation5 + $0x8] sm:$0xff]
  %v717 = vadd.f32 %v715, %v716
  %v718 = vrot.slane %v717, 4
  %v719 = vadd.f32 %v717, %v718
  %v720 = vrot.slane %v719, 2
  %v721 = vadd.f32 %v719, %v720
  %v722 = vrot.slane %v721, 1
  %v723 = vadd.f32 %v721, %v722
  %v724 = vadd.f32 %v723, 0.0
  %v725 = vld [vmem:[#allocation5 + $0x14] sm:$0xff]
  %v726 = vld [vmem:[#allocation5 + $0x1c] sm:$0xff]
  %v727 = vadd.f32 %v725, %v726
  %v728 = vrot.slane %v727, 4
  %v729 = vadd.f32 %v727, %v728
  %v730 = vrot.slane %v729, 2
  %v731 = vadd.f32 %v729, %v730
  %v732 = vrot.slane %v731, 1
  %v733 = vadd.f32 %v731, %v732
  %v734 = vadd.f32 %v724, %v733
  %735 = vrot.lane.b32.xlu0 %v734, 8
  %v736 = vpop.permute.xlu0 %735
  %v737 = vadd.f32 %v734, %v736
  %738 = vrot.lane.b32.xlu0 %v737, 16
  %v739 = vpop.permute.xlu0 %738
  %v740 = vadd.f32 %v737, %v739
  %741 = vrot.lane.b32.xlu0 %v740, 32
  %v742 = vpop.permute.xlu0 %741
  %v743 = vadd.f32 %v740, %v742
  %744 = vrot.lane.b32.xlu0 %v743, 64
  %v745 = vpop.permute.xlu0 %744
  %v746 = vadd.f32 %v743, %v745
  %v747 = vrcp.pop 512.0
  %v748 = vmul.f32 %v746, %v747
  %v749 = vlaneseq
  %v750 = vshrl.u32 %v749, 7
  %v751 = vsub.s32 0, %v750
  %v752 = vrot.slane %v748, %v751
  %v753 = vsub.f32 %v715, %v752
  %v754 = vsub.f32 %v716, %v752
  %v755 = vmul.f32 %v753, %v753
  %v756 = vmul.f32 %v754, %v754
  %v757 = vadd.f32 %v755, %v756
  %v758 = vrot.slane %v757, 4
  %v759 = vadd.f32 %v757, %v758
  %v760 = vrot.slane %v759, 2
  %v761 = vadd.f32 %v759, %v760
  %v762 = vrot.slane %v761, 1
  %v763 = vadd.f32 %v761, %v762
  %v764 = vadd.f32 %v763, 0.0
  %v765 = vsub.f32 %v725, %v752
  %v766 = vsub.f32 %v726, %v752
  %v767 = vmul.f32 %v765, %v765
  %v768 = vmul.f32 %v766, %v766
  %v769 = vadd.f32 %v767, %v768
  %v770 = vrot.slane %v769, 4
  %v771 = vadd.f32 %v769, %v770
  %v772 = vrot.slane %v771, 2
  %v773 = vadd.f32 %v771, %v772
  %v774 = vrot.slane %v773, 1
  %v775 = vadd.f32 %v773, %v774
  %v776 = vadd.f32 %v764, %v775
  %777 = vrot.lane.b32.xlu0 %v776, 8
  %v778 = vpop.permute.xlu0 %777
  %v779 = vadd.f32 %v776, %v778
  %780 = vrot.lane.b32.xlu0 %v779, 16
  %v781 = vpop.permute.xlu0 %780
  %v782 = vadd.f32 %v779, %v781
  %783 = vrot.lane.b32.xlu0 %v782, 32
  %v784 = vpop.permute.xlu0 %783
  %v785 = vadd.f32 %v782, %v784
  %786 = vrot.lane.b32.xlu0 %v785, 64
  %v787 = vpop.permute.xlu0 %786
  %v788 = vadd.f32 %v785, %v787
  %v789 = vmul.f32 %v788, %v747
  %v790 = vld [vmem:[%s2] sm:$0x1]
  %v791 = vadd.f32 %v789, 1e-05
  %v792 = vrsqrt.pop %v791
  %v793 = vmul.f32 %v790, %v792
  %v794 = vld [vmem:[%s3] sm:$0x1]
  %v795 = vmul.f32 %v793, %v748
  %v796 = vsub.f32 %v794, %v795
  %v798 = vlaneseq
  %v799 = vshrl.u32 %v798, 7
  %v800 = vsub.s32 0, %v799
  %v801 = vrot.slane %v793, %v800
  %v803 = vmul.f32 %v715, %v801
  %v804 = vmul.f32 %v716, %v801
  %v806 = vlaneseq
  %v807 = vshrl.u32 %v806, 7
  %v808 = vsub.s32 0, %v807
  %v809 = vrot.slane %v796, %v808
  %v811 = vadd.f32 %v803, %v809
  %v812 = vadd.f32 %v804, %v809
  %vm813 = vcmp.gt.f32.partialorder %v811, 0.0
  %vm814 = vcmp.gt.f32.partialorder %v812, 0.0
  %v815 = vmul.f32 %v811, 0.01
  %v816 = vmul.f32 %v812, 0.01
  %v817 = vsel %vm813, %v811, %v815
  %v818 = vsel %vm814, %v812, %v816
  %819 = vst [vmem:[#allocation5] sm:$0xff] %v817
  %820 = vst [vmem:[#allocation5 + $0x8] sm:$0xff] %v818
  %v821 = vld [vmem:[#allocation5] ss:$2 sm:$0xff]
  %s822 = scalar_lea.vmem [#allocation5], 1
  %v823 = vld [vmem:[%s822] ss:$2 sm:$0xff]
  %v824 = vmax.f32 %v821, %v823
  %825 = vrot.lane.b32.xlu0 %v824, 120
  %v826 = vpop.permute.xlu0 %825
  %v827 = vmax.f32 %v824, %v826
  %v828 = vld [vmem:[#allocation5 + $0x14] sm:$0xff]
  %v829 = vld [vmem:[#allocation5 + $0x1c] sm:$0xff]
  %v830 = vmul.f32 %v828, %v801
  %v831 = vmul.f32 %v829, %v801
  %v832 = vadd.f32 %v830, %v809
  %v833 = vadd.f32 %v831, %v809
  %vm834 = vcmp.gt.f32.partialorder %v832, 0.0
  %vm835 = vcmp.gt.f32.partialorder %v833, 0.0
  %v836 = vmul.f32 %v832, 0.01
  %v837 = vmul.f32 %v833, 0.01
  %v838 = vsel %vm834, %v832, %v836
  %v839 = vsel %vm835, %v833, %v837
  %840 = vst [vmem:[#allocation5 + $0x14] sm:$0xff] %v838
  %841 = vst [vmem:[#allocation5 + $0x1c] sm:$0xff] %v839
  %s842 = scalar_lea.vmem [#allocation5], 20
  %v843 = vld [vmem:[%s842] ss:$2 sm:$0xff]
  %s844 = scalar_lea.vmem [#allocation5], 21
  %v845 = vld [vmem:[%s844] ss:$2 sm:$0xff]
  %v846 = vmax.f32 %v843, %v845
  %847 = vrot.lane.b32.xlu0 %v846, 120
  %v848 = vpop.permute.xlu0 %847
  %v849 = vmax.f32 %v846, %v848
  %v850 = vpack.c.bf16 %v849, %v827
  %v851 = vld [vmem:[%s4] sm:$0xf]
  %v852 = vld [vmem:[%s4 + $0x4] sm:$0xf]
  %v853 = vld [vmem:[%s4 + $0x8] sm:$0xf]
  %v854 = vld [vmem:[%s4 + $0xc] sm:$0xf]
  %v855 = vld [vmem:[%s4 + $0x10] sm:$0xf]
  %v856 = vld [vmem:[%s4 + $0x14] sm:$0xf]
  %v857 = vld [vmem:[%s4 + $0x18] sm:$0xf]
  %v858 = vld [vmem:[%s4 + $0x1c] sm:$0xf]
  %v859 = vld [vmem:[%s4 + $0x20] sm:$0xf]
  %v860 = vld [vmem:[%s4 + $0x24] sm:$0xf]
  %v861 = vld [vmem:[%s4 + $0x28] sm:$0xf]
  %v862 = vld [vmem:[%s4 + $0x2c] sm:$0xf]
  %v863 = vld [vmem:[%s4 + $0x30] sm:$0xf]
  %v864 = vld [vmem:[%s4 + $0x34] sm:$0xf]
  %v865 = vld [vmem:[%s4 + $0x38] sm:$0xf]
  %v866 = vld [vmem:[%s4 + $0x3c] sm:$0xf]
  %v883 = vunpack.c.l.b16 %v851
  %v884 = vunpack.c.l.b16 %v852
  %v885 = vunpack.c.l.b16 %v853
  %v886 = vunpack.c.l.b16 %v854
  %v887 = vunpack.c.l.b16 %v855
  %v888 = vunpack.c.l.b16 %v856
  %v889 = vunpack.c.l.b16 %v857
  %v890 = vunpack.c.l.b16 %v858
  %v891 = vunpack.c.l.b16 %v859
  %v892 = vunpack.c.l.b16 %v860
  %v893 = vunpack.c.l.b16 %v861
  %v894 = vunpack.c.l.b16 %v862
  %v895 = vunpack.c.l.b16 %v863
  %v896 = vunpack.c.l.b16 %v864
  %v897 = vunpack.c.l.b16 %v865
  %v898 = vunpack.c.l.b16 %v866
  %v899 = vpack.c.b16 %v884, %v883
  %v900 = vpack.c.b16 %v886, %v885
  %v901 = vpack.c.b16 %v888, %v887
  %v902 = vpack.c.b16 %v890, %v889
  %v903 = vpack.c.b16 %v892, %v891
  %v904 = vpack.c.b16 %v894, %v893
  %v905 = vpack.c.b16 %v896, %v895
  %v906 = vpack.c.b16 %v898, %v897
  %915 = vmatprep.subr.bf16.mxu0 0
  %916 = vmatpush1.bf16.msra.mxu0 %v906
  %917 = vmatprep.subr.bf16.mxu0 0
  %918 = vmatpush1.bf16.msra.mxu0 %v905
  %919 = vmatprep.subr.bf16.mxu0 0
  %920 = vmatpush1.bf16.msra.mxu0 %v904
  %921 = vmatprep.subr.bf16.mxu0 0
  %922 = vmatpush1.bf16.msra.mxu0 %v903
  %923 = vmatprep.subr.bf16.mxu0 0
  %924 = vmatpush1.bf16.msra.mxu0 %v902
  %925 = vmatprep.subr.bf16.mxu0 0
  %926 = vmatpush1.bf16.msra.mxu0 %v901
  %927 = vmatprep.subr.bf16.mxu0 0
  %928 = vmatpush1.bf16.msra.mxu0 %v900
  %929 = vmatprep.subr.bf16.mxu0 0
  %930 = vmatpush1.bf16.msra.mxu0 %v899
  %931 = vmatprep.subr.bf16.mxu0 0
  %932 = vmatpush2.bf16.msra.mxu0 0
  %933 = vmatprep.subr.bf16.mxu0 0
  %934 = vmatpush2.bf16.msra.mxu0 0
  %935 = vmatprep.subr.bf16.mxu0 0
  %936 = vmatpush2.bf16.msra.mxu0 0
  %937 = vmatprep.subr.bf16.mxu0 0
  %938 = vmatpush2.bf16.msra.mxu0 0
  %939 = vmatprep.subr.bf16.mxu0 0
  %940 = vmatpush2.bf16.msra.mxu0 0
  %941 = vmatprep.subr.bf16.mxu0 0
  %942 = vmatpush2.bf16.msra.mxu0 0
  %943 = vmatprep.subr.bf16.mxu0 0
  %944 = vmatpush2.bf16.msra.mxu0 0
  %945 = vmatprep.subr.bf16.mxu0 0
  %946 = vmatpush2.bf16.msra.mxu0 0
  %947 = vmatprep.mubr.bf16.mxu0 0
  %948 = vmatmul.mubr.bf16.gmra.mxu0 %v850
  %v949 = vpop.f32.mrf.mxu0
  %v950 = vadd.f32 0.0, %v949
  %v951 = vpop.f32.mrf.mxu0
  %v952 = vpop.f32.mrf.mxu0
  %v953 = vadd.f32 0.0, %v952
  %v954 = vpop.f32.mrf.mxu0
  %955 = vdwg.mxu0
  %v956 = vpack.c.bf16 %v950, %v950
  %v958 = vunpack.c.l.b16 %v956
  %v959 = vpack.c.b16 %v958, %v958
  %v960 = vrot.slane %v959, 7
  %v961 = vrot.slane %v960, 4
  %962 = vrot.lane.b32.xlu0 %v960, 16
  %v963 = vpop.permute.xlu0 %962
  %964 = vrot.lane.b32.xlu0 %v961, 16
  %v965 = vpop.permute.xlu0 %964
  %vm968 = vcmask 650369
  %969 = vst.msk [vmem:[#allocation3] sm:$0xe] %vm968, %v963
  %vm970 = vcmask 647296
  %971 = vst.msk [vmem:[#allocation3 + $0x4] sm:$0x1] %vm970, %v965
  %v972 = vpack.c.bf16 %v953, %v953
  %v974 = vunpack.c.l.b16 %v972
  %v975 = vpack.c.b16 %v974, %v974
  %v976 = vrot.slane %v975, 5
  %v977 = vrot.slane %v976, 4
  %978 = vrot.lane.b32.xlu0 %v976, 16
  %v979 = vpop.permute.xlu0 %978
  %980 = vrot.lane.b32.xlu0 %v977, 16
  %v981 = vpop.permute.xlu0 %980
  %vm984 = vcmask 650371
  %985 = vst.msk [vmem:[#allocation3 + $0x4] sm:$0x8] %vm984, %v979
  %vm986 = vcmask 649344
  %987 = vst.msk [vmem:[#allocation3 + $0x8] sm:$0x7] %vm986, %v981
  %v988 = vld [vmem:[#allocation3] sm:$0xf]
  %v989 = vld [vmem:[#allocation3 + $0x4] sm:$0xf]
  %v990 = vld [vmem:[#allocation3 + $0x8] sm:$0x3]
  %v991 = vld [vmem:[%s5] sm:$0xf]
  %v992 = vld [vmem:[%s5 + $0x4] sm:$0xf]
  %v993 = vld [vmem:[%s5 + $0x8] sm:$0xf]
  %v994 = vld [vmem:[%s5 + $0xc] sm:$0xf]
  %v995 = vld [vmem:[%s5 + $0x10] sm:$0xf]
  %v996 = vld [vmem:[%s5 + $0x14] sm:$0xf]
  %v997 = vld [vmem:[%s5 + $0x18] sm:$0xf]
  %v998 = vld [vmem:[%s5 + $0x1c] sm:$0xf]
  %v999 = vld [vmem:[%s5 + $0x20] sm:$0xf]
  %v1000 = vld [vmem:[%s5 + $0x24] sm:$0xf]
  %v1001 = vld [vmem:[%s5 + $0x28] sm:$0xf]
  %v1002 = vld [vmem:[%s5 + $0x2c] sm:$0xf]
  %v1003 = vld [vmem:[#allocation3 + $0x8] sm:$0x7]
  %s1004 = scalar_lea.vmem %s5, 48
  %v1005 = vld [vmem:[%s1004] sm:$0xf]
  %v1006 = vld [vmem:[%s1004 + $0x4] sm:$0xf]
  %v1007 = vld [vmem:[%s1004 + $0x8] sm:$0xf]
  %v1008 = vld [vmem:[%s1004 + $0xc] sm:$0xf]
  %v1009 = vld [vmem:[%s1004 + $0x10] sm:$0xf]
  %v1010 = vld [vmem:[%s1004 + $0x14] sm:$0xf]
  %v1011 = vld [vmem:[%s1004 + $0x18] sm:$0xf]
  %v1012 = vld [vmem:[%s1004 + $0x1c] sm:$0xf]
  %v1013 = vld [vmem:[%s1004 + $0x20] sm:$0xf]
  %v1014 = vld [vmem:[%s1004 + $0x24] sm:$0xf]
  %v1015 = vld [vmem:[%s1004 + $0x28] sm:$0xf]
  %v1016 = vld [vmem:[%s1004 + $0x2c] sm:$0xf]
  %v1020 = vunpack.c.l.b16 %v988
  %v1021 = vunpack.c.l.b16 %v989
  %v1022 = vunpack.c.l.b16 %v1003
  %v1023 = vpack.c.b16 %v1021, %v1020
  %v1024 = vpack.c.b16 %v1022, %v1022
  %v1026 = vshrl.u32 %v1023, 16
  %v1028 = vshll.u32 %v1023, 16
  %v1030 = vrot.slane %v1028, 1
  %v1031 = vor.u32 %v1026, %v1030
  %v1033 = vshll.u32 %v1024, 16
  %v1035 = vrot.slane %v1033, 1
  %v1036 = vsel %vm140, %v1031, %v1035
  %v1037 = vshrl.u32 %v1024, 16
  %v1039 = vor.u32 %v1037, %v1035
  %v1052 = vunpack.c.l.b16 %v1005
  %v1053 = vunpack.c.l.b16 %v1006
  %v1054 = vunpack.c.l.b16 %v1007
  %v1055 = vunpack.c.l.b16 %v1008
  %v1056 = vunpack.c.l.b16 %v1009
  %v1057 = vunpack.c.l.b16 %v1010
  %v1058 = vunpack.c.l.b16 %v1011
  %v1059 = vunpack.c.l.b16 %v1012
  %v1060 = vunpack.c.l.b16 %v1013
  %v1061 = vunpack.c.l.b16 %v1014
  %v1062 = vunpack.c.l.b16 %v1015
  %v1063 = vunpack.c.l.b16 %v1016
  %v1064 = vpack.c.b16 %v1053, %v1052
  %v1065 = vpack.c.b16 %v1055, %v1054
  %v1066 = vpack.c.b16 %v1057, %v1056
  %v1067 = vpack.c.b16 %v1059, %v1058
  %v1068 = vpack.c.b16 %v1061, %v1060
  %v1069 = vpack.c.b16 %v1063, %v1062
  %vm1076 = vcmask 785408
  %v1078 = vsel %vm1076, %v1036, 0
  %v1081 = vsel %vm1076, %v1039, 0
  %1083 = vmatprep.subr.bf16.mxu0 0
  %1084 = vmatpush1.bf16.msra.mxu0 0
  %1085 = vmatprep.subr.bf16.mxu0 0
  %1086 = vmatpush1.bf16.msra.mxu0 0
  %1087 = vmatprep.subr.bf16.mxu0 0
  %1088 = vmatpush1.bf16.msra.mxu0 %v1069
  %1089 = vmatprep.subr.bf16.mxu0 0
  %1090 = vmatpush1.bf16.msra.mxu0 %v1068
  %1091 = vmatprep.subr.bf16.mxu0 0
  %1092 = vmatpush1.bf16.msra.mxu0 %v1067
  %1093 = vmatprep.subr.bf16.mxu0 0
  %1094 = vmatpush1.bf16.msra.mxu0 %v1066
  %1095 = vmatprep.subr.bf16.mxu0 0
  %1096 = vmatpush1.bf16.msra.mxu0 %v1065
  %1097 = vmatprep.subr.bf16.mxu0 0
  %1098 = vmatpush1.bf16.msra.mxu0 %v1064
  %1099 = vmatprep.subr.bf16.mxu0 0
  %1100 = vmatpush2.bf16.msra.mxu0 0
  %1101 = vmatprep.subr.bf16.mxu0 0
  %1102 = vmatpush2.bf16.msra.mxu0 0
  %1103 = vmatprep.subr.bf16.mxu0 0
  %1104 = vmatpush2.bf16.msra.mxu0 0
  %1105 = vmatprep.subr.bf16.mxu0 0
  %1106 = vmatpush2.bf16.msra.mxu0 0
  %1107 = vmatprep.subr.bf16.mxu0 0
  %1108 = vmatpush2.bf16.msra.mxu0 0
  %1109 = vmatprep.subr.bf16.mxu0 0
  %1110 = vmatpush2.bf16.msra.mxu0 0
  %1111 = vmatprep.subr.bf16.mxu0 0
  %1112 = vmatpush2.bf16.msra.mxu0 0
  %1113 = vmatprep.subr.bf16.mxu0 0
  %1114 = vmatpush2.bf16.msra.mxu0 0
  %1115 = vmatprep.mubr.bf16.mxu0 0
  %1116 = vmatmul.mubr.bf16.gmra.mxu0 %v1078
  %v1117 = vpop.f32.mrf.mxu0
  %v1118 = vadd.f32 0.0, %v1117
  %v1119 = vpop.f32.mrf.mxu0
  %v1120 = vpop.f32.mrf.mxu0
  %v1121 = vadd.f32 0.0, %v1120
  %v1122 = vpop.f32.mrf.mxu0
  %1123 = vmatprep.mubr.bf16.mxu0 0
  %1124 = vmatmul.mubr.bf16.gmra.mxu0 %v1081
  %v1125 = vpop.f32.mrf.mxu0
  %v1126 = vadd.f32 0.0, %v1125
  %v1127 = vpop.f32.mrf.mxu0
  %v1128 = vpop.f32.mrf.mxu0
  %v1129 = vpop.f32.mrf.mxu0
  %1130 = vdwg.mxu0
  %v1132 = vunpack.c.l.b16 %v990
  %v1133 = vpack.c.b16 %v1132, %v1132
  %v1146 = vunpack.c.l.b16 %v991
  %v1147 = vunpack.c.l.b16 %v992
  %v1148 = vunpack.c.l.b16 %v993
  %v1149 = vunpack.c.l.b16 %v994
  %v1150 = vunpack.c.l.b16 %v995
  %v1151 = vunpack.c.l.b16 %v996
  %v1152 = vunpack.c.l.b16 %v997
  %v1153 = vunpack.c.l.b16 %v998
  %v1154 = vunpack.c.l.b16 %v999
  %v1155 = vunpack.c.l.b16 %v1000
  %v1156 = vunpack.c.l.b16 %v1001
  %v1157 = vunpack.c.l.b16 %v1002
  %v1158 = vpack.c.b16 %v1147, %v1146
  %v1159 = vpack.c.b16 %v1149, %v1148
  %v1160 = vpack.c.b16 %v1151, %v1150
  %v1161 = vpack.c.b16 %v1153, %v1152
  %v1162 = vpack.c.b16 %v1155, %v1154
  %v1163 = vpack.c.b16 %v1157, %v1156
  %v1170 = vsel %vm1076, %v1023, 0
  %v1173 = vsel %vm1076, %v1133, 0
  %1175 = vmatprep.subr.bf16.mxu0 0
  %1176 = vmatpush1.bf16.msra.mxu0 0
  %1177 = vmatprep.subr.bf16.mxu0 0
  %1178 = vmatpush1.bf16.msra.mxu0 0
  %1179 = vmatprep.subr.bf16.mxu0 0
  %1180 = vmatpush1.bf16.msra.mxu0 %v1163
  %1181 = vmatprep.subr.bf16.mxu0 0
  %1182 = vmatpush1.bf16.msra.mxu0 %v1162
  %1183 = vmatprep.subr.bf16.mxu0 0
  %1184 = vmatpush1.bf16.msra.mxu0 %v1161
  %1185 = vmatprep.subr.bf16.mxu0 0
  %1186 = vmatpush1.bf16.msra.mxu0 %v1160
  %1187 = vmatprep.subr.bf16.mxu0 0
  %1188 = vmatpush1.bf16.msra.mxu0 %v1159
  %1189 = vmatprep.subr.bf16.mxu0 0
  %1190 = vmatpush1.bf16.msra.mxu0 %v1158
  %1191 = vmatprep.subr.bf16.mxu0 0
  %1192 = vmatpush2.bf16.msra.mxu0 0
  %1193 = vmatprep.subr.bf16.mxu0 0
  %1194 = vmatpush2.bf16.msra.mxu0 0
  %1195 = vmatprep.subr.bf16.mxu0 0
  %1196 = vmatpush2.bf16.msra.mxu0 0
  %1197 = vmatprep.subr.bf16.mxu0 0
  %1198 = vmatpush2.bf16.msra.mxu0 0
  %1199 = vmatprep.subr.bf16.mxu0 0
  %1200 = vmatpush2.bf16.msra.mxu0 0
  %1201 = vmatprep.subr.bf16.mxu0 0
  %1202 = vmatpush2.bf16.msra.mxu0 0
  %1203 = vmatprep.subr.bf16.mxu0 0
  %1204 = vmatpush2.bf16.msra.mxu0 0
  %1205 = vmatprep.subr.bf16.mxu0 0
  %1206 = vmatpush2.bf16.msra.mxu0 0
  %1207 = vmatprep.mubr.bf16.mxu0 0
  %1208 = vmatmul.mubr.bf16.gmra.mxu0 %v1170
  %v1209 = vpop.f32.mrf.mxu0
  %v1210 = vadd.f32 %v1118, %v1209
  %v1211 = vpop.f32.mrf.mxu0
  %v1212 = vpop.f32.mrf.mxu0
  %v1213 = vadd.f32 %v1121, %v1212
  %v1214 = vpop.f32.mrf.mxu0
  %1215 = vmatprep.mubr.bf16.mxu0 0
  %1216 = vmatmul.mubr.bf16.gmra.mxu0 %v1173
  %v1217 = vpop.f32.mrf.mxu0
  %v1218 = vadd.f32 %v1126, %v1217
  %v1219 = vpop.f32.mrf.mxu0
  %v1220 = vpop.f32.mrf.mxu0
  %v1221 = vpop.f32.mrf.mxu0
  %1222 = vdwg.mxu0
  %v1223 = vld [vmem:[#allocation3] sm:$0xe]
  %s1224 = scalar_lea.vmem %s5, 96
  %v1225 = vld [vmem:[%s1224] sm:$0xf]
  %v1226 = vld [vmem:[%s1224 + $0x4] sm:$0xf]
  %v1227 = vld [vmem:[%s1224 + $0x8] sm:$0xf]
  %v1228 = vld [vmem:[%s1224 + $0xc] sm:$0xf]
  %v1229 = vld [vmem:[%s1224 + $0x10] sm:$0xf]
  %v1230 = vld [vmem:[%s1224 + $0x14] sm:$0xf]
  %v1231 = vld [vmem:[%s1224 + $0x18] sm:$0xf]
  %v1232 = vld [vmem:[%s1224 + $0x1c] sm:$0xf]
  %v1233 = vld [vmem:[%s1224 + $0x20] sm:$0xf]
  %v1234 = vld [vmem:[%s1224 + $0x24] sm:$0xf]
  %v1235 = vld [vmem:[%s1224 + $0x28] sm:$0xf]
  %v1236 = vld [vmem:[%s1224 + $0x2c] sm:$0xf]
  %v1238 = vunpack.c.l.b16 %v1223
  %v1239 = vpack.c.b16 %v1021, %v1238
  %v1240 = vrot.slane %v1239, 1
  %v1241 = vrot.slane %v1024, 1
  %v1242 = vsel %vm362, %v1240, %v1241
  %v1255 = vunpack.c.l.b16 %v1225
  %v1256 = vunpack.c.l.b16 %v1226
  %v1257 = vunpack.c.l.b16 %v1227
  %v1258 = vunpack.c.l.b16 %v1228
  %v1259 = vunpack.c.l.b16 %v1229
  %v1260 = vunpack.c.l.b16 %v1230
  %v1261 = vunpack.c.l.b16 %v1231
  %v1262 = vunpack.c.l.b16 %v1232
  %v1263 = vunpack.c.l.b16 %v1233
  %v1264 = vunpack.c.l.b16 %v1234
  %v1265 = vunpack.c.l.b16 %v1235
  %v1266 = vunpack.c.l.b16 %v1236
  %v1267 = vpack.c.b16 %v1256, %v1255
  %v1268 = vpack.c.b16 %v1258, %v1257
  %v1269 = vpack.c.b16 %v1260, %v1259
  %v1270 = vpack.c.b16 %v1262, %v1261
  %v1271 = vpack.c.b16 %v1264, %v1263
  %v1272 = vpack.c.b16 %v1266, %v1265
  %v1280 = vsel %vm1076, %v1242, 0
  %v1283 = vsel %vm1076, %v1241, 0
  %1285 = vmatprep.subr.bf16.mxu0 0
  %1286 = vmatpush1.bf16.msra.mxu0 0
  %1287 = vmatprep.subr.bf16.mxu0 0
  %1288 = vmatpush1.bf16.msra.mxu0 0
  %1289 = vmatprep.subr.bf16.mxu0 0
  %1290 = vmatpush1.bf16.msra.mxu0 %v1272
  %1291 = vmatprep.subr.bf16.mxu0 0
  %1292 = vmatpush1.bf16.msra.mxu0 %v1271
  %1293 = vmatprep.subr.bf16.mxu0 0
  %1294 = vmatpush1.bf16.msra.mxu0 %v1270
  %1295 = vmatprep.subr.bf16.mxu0 0
  %1296 = vmatpush1.bf16.msra.mxu0 %v1269
  %1297 = vmatprep.subr.bf16.mxu0 0
  %1298 = vmatpush1.bf16.msra.mxu0 %v1268
  %1299 = vmatprep.subr.bf16.mxu0 0
  %1300 = vmatpush1.bf16.msra.mxu0 %v1267
  %1301 = vmatprep.subr.bf16.mxu0 0
  %1302 = vmatpush2.bf16.msra.mxu0 0
  %1303 = vmatprep.subr.bf16.mxu0 0
  %1304 = vmatpush2.bf16.msra.mxu0 0
  %1305 = vmatprep.subr.bf16.mxu0 0
  %1306 = vmatpush2.bf16.msra.mxu0 0
  %1307 = vmatprep.subr.bf16.mxu0 0
  %1308 = vmatpush2.bf16.msra.mxu0 0
  %1309 = vmatprep.subr.bf16.mxu0 0
  %1310 = vmatpush2.bf16.msra.mxu0 0
  %1311 = vmatprep.subr.bf16.mxu0 0
  %1312 = vmatpush2.bf16.msra.mxu0 0
  %1313 = vmatprep.subr.bf16.mxu0 0
  %1314 = vmatpush2.bf16.msra.mxu0 0
  %1315 = vmatprep.subr.bf16.mxu0 0
  %1316 = vmatpush2.bf16.msra.mxu0 0
  %1317 = vmatprep.mubr.bf16.mxu0 0
  %1318 = vmatmul.mubr.bf16.gmra.mxu0 %v1280
  %v1319 = vpop.f32.mrf.mxu0
  %v1320 = vadd.f32 0.0, %v1319
  %v1321 = vpop.f32.mrf.mxu0
  %v1322 = vpop.f32.mrf.mxu0
  %v1323 = vadd.f32 0.0, %v1322
  %v1324 = vpop.f32.mrf.mxu0
  %1325 = vmatprep.mubr.bf16.mxu0 0
  %1326 = vmatmul.mubr.bf16.gmra.mxu0 %v1283
  %v1327 = vpop.f32.mrf.mxu0
  %v1328 = vadd.f32 0.0, %v1327
  %v1329 = vpop.f32.mrf.mxu0
  %v1330 = vpop.f32.mrf.mxu0
  %v1331 = vpop.f32.mrf.mxu0
  %1332 = vdwg.mxu0
  %v1333 = vadd.f32 %v1210, %v1320
  %v1334 = vadd.f32 %v1213, %v1323
  %v1335 = vadd.f32 %v1218, %v1328
  %v1336 = vld [vmem:[#allocation3 + $0x8] sm:$0xf]
  %s1337 = scalar_lea.vmem %s5, 144
  %v1338 = vld [vmem:[%s1337] sm:$0xf]
  %v1339 = vld [vmem:[%s1337 + $0x4] sm:$0xf]
  %v1340 = vld [vmem:[%s1337 + $0x8] sm:$0xf]
  %v1341 = vld [vmem:[%s1337 + $0xc] sm:$0xf]
  %v1342 = vld [vmem:[%s1337 + $0x10] sm:$0xf]
  %v1343 = vld [vmem:[%s1337 + $0x14] sm:$0xf]
  %v1344 = vld [vmem:[%s1337 + $0x18] sm:$0xf]
  %v1345 = vld [vmem:[%s1337 + $0x1c] sm:$0xf]
  %v1346 = vld [vmem:[%s1337 + $0x20] sm:$0xf]
  %v1347 = vld [vmem:[%s1337 + $0x24] sm:$0xf]
  %v1348 = vld [vmem:[%s1337 + $0x28] sm:$0xf]
  %v1349 = vld [vmem:[%s1337 + $0x2c] sm:$0xf]
  %v1351 = vunpack.c.l.b16 %v1336
  %v1352 = vpack.c.b16 %v1351, %v1351
  %v1354 = vshrl.u32 %v1239, 16
  %v1356 = vrot.slane %v1354, 1
  %v1357 = vshll.u32 %v1239, 16
  %v1359 = vrot.slane %v1357, 2
  %v1360 = vor.u32 %v1356, %v1359
  %v1362 = vshrl.u32 %v1352, 16
  %v1364 = vrot.slane %v1362, 1
  %v1365 = vshll.u32 %v1352, 16
  %v1367 = vrot.slane %v1365, 2
  %v1368 = vor.u32 %v1364, %v1367
  %v1369 = vsel %vm477, %v1360, %v1368
  %v1382 = vunpack.c.l.b16 %v1338
  %v1383 = vunpack.c.l.b16 %v1339
  %v1384 = vunpack.c.l.b16 %v1340
  %v1385 = vunpack.c.l.b16 %v1341
  %v1386 = vunpack.c.l.b16 %v1342
  %v1387 = vunpack.c.l.b16 %v1343
  %v1388 = vunpack.c.l.b16 %v1344
  %v1389 = vunpack.c.l.b16 %v1345
  %v1390 = vunpack.c.l.b16 %v1346
  %v1391 = vunpack.c.l.b16 %v1347
  %v1392 = vunpack.c.l.b16 %v1348
  %v1393 = vunpack.c.l.b16 %v1349
  %v1394 = vpack.c.b16 %v1383, %v1382
  %v1395 = vpack.c.b16 %v1385, %v1384
  %v1396 = vpack.c.b16 %v1387, %v1386
  %v1397 = vpack.c.b16 %v1389, %v1388
  %v1398 = vpack.c.b16 %v1391, %v1390
  %v1399 = vpack.c.b16 %v1393, %v1392
  %v1407 = vsel %vm1076, %v1369, 0
  %v1410 = vsel %vm1076, %v1368, 0
  %1412 = vmatprep.subr.bf16.mxu0 0
  %1413 = vmatpush1.bf16.msra.mxu0 0
  %1414 = vmatprep.subr.bf16.mxu0 0
  %1415 = vmatpush1.bf16.msra.mxu0 0
  %1416 = vmatprep.subr.bf16.mxu0 0
  %1417 = vmatpush1.bf16.msra.mxu0 %v1399
  %1418 = vmatprep.subr.bf16.mxu0 0
  %1419 = vmatpush1.bf16.msra.mxu0 %v1398
  %1420 = vmatprep.subr.bf16.mxu0 0
  %1421 = vmatpush1.bf16.msra.mxu0 %v1397
  %1422 = vmatprep.subr.bf16.mxu0 0
  %1423 = vmatpush1.bf16.msra.mxu0 %v1396
  %1424 = vmatprep.subr.bf16.mxu0 0
  %1425 = vmatpush1.bf16.msra.mxu0 %v1395
  %1426 = vmatprep.subr.bf16.mxu0 0
  %1427 = vmatpush1.bf16.msra.mxu0 %v1394
  %1428 = vmatprep.subr.bf16.mxu0 0
  %1429 = vmatpush2.bf16.msra.mxu0 0
  %1430 = vmatprep.subr.bf16.mxu0 0
  %1431 = vmatpush2.bf16.msra.mxu0 0
  %1432 = vmatprep.subr.bf16.mxu0 0
  %1433 = vmatpush2.bf16.msra.mxu0 0
  %1434 = vmatprep.subr.bf16.mxu0 0
  %1435 = vmatpush2.bf16.msra.mxu0 0
  %1436 = vmatprep.subr.bf16.mxu0 0
  %1437 = vmatpush2.bf16.msra.mxu0 0
  %1438 = vmatprep.subr.bf16.mxu0 0
  %1439 = vmatpush2.bf16.msra.mxu0 0
  %1440 = vmatprep.subr.bf16.mxu0 0
  %1441 = vmatpush2.bf16.msra.mxu0 0
  %1442 = vmatprep.subr.bf16.mxu0 0
  %1443 = vmatpush2.bf16.msra.mxu0 0
  %1444 = vmatprep.mubr.bf16.mxu0 0
  %1445 = vmatmul.mubr.bf16.gmra.mxu0 %v1407
  %v1446 = vpop.f32.mrf.mxu0
  %v1447 = vadd.f32 0.0, %v1446
  %v1448 = vpop.f32.mrf.mxu0
  %v1449 = vpop.f32.mrf.mxu0
  %v1450 = vadd.f32 0.0, %v1449
  %v1451 = vpop.f32.mrf.mxu0
  %1452 = vmatprep.mubr.bf16.mxu0 0
  %1453 = vmatmul.mubr.bf16.gmra.mxu0 %v1410
  %v1454 = vpop.f32.mrf.mxu0
  %v1455 = vadd.f32 0.0, %v1454
  %v1456 = vpop.f32.mrf.mxu0
  %v1457 = vpop.f32.mrf.mxu0
  %v1458 = vpop.f32.mrf.mxu0
  %1459 = vdwg.mxu0
  %v1460 = vadd.f32 %v1333, %v1447
  %v1461 = vadd.f32 %v1334, %v1450
  %v1462 = vadd.f32 %v1335, %v1455
  %v1463 = vld [vmem:[#allocation3] sm:$0xc]
  %s1464 = scalar_lea.vmem %s5, 192
  %v1465 = vld [vmem:[%s1464] sm:$0xf]
  %v1466 = vld [vmem:[%s1464 + $0x4] sm:$0xf]
  %v1467 = vld [vmem:[%s1464 + $0x8] sm:$0xf]
  %v1468 = vld [vmem:[%s1464 + $0xc] sm:$0xf]
  %v1469 = vld [vmem:[%s1464 + $0x10] sm:$0xf]
  %v1470 = vld [vmem:[%s1464 + $0x14] sm:$0xf]
  %v1471 = vld [vmem:[%s1464 + $0x18] sm:$0xf]
  %v1472 = vld [vmem:[%s1464 + $0x1c] sm:$0xf]
  %v1473 = vld [vmem:[%s1464 + $0x20] sm:$0xf]
  %v1474 = vld [vmem:[%s1464 + $0x24] sm:$0xf]
  %v1475 = vld [vmem:[%s1464 + $0x28] sm:$0xf]
  %v1476 = vld [vmem:[%s1464 + $0x2c] sm:$0xf]
  %v1478 = vunpack.c.l.b16 %v1463
  %v1479 = vpack.c.b16 %v1021, %v1478
  %v1480 = vrot.slane %v1479, 2
  %v1481 = vrot.slane %v1352, 2
  %v1482 = vsel %vm608, %v1480, %v1481
  %v1495 = vunpack.c.l.b16 %v1465
  %v1496 = vunpack.c.l.b16 %v1466
  %v1497 = vunpack.c.l.b16 %v1467
  %v1498 = vunpack.c.l.b16 %v1468
  %v1499 = vunpack.c.l.b16 %v1469
  %v1500 = vunpack.c.l.b16 %v1470
  %v1501 = vunpack.c.l.b16 %v1471
  %v1502 = vunpack.c.l.b16 %v1472
  %v1503 = vunpack.c.l.b16 %v1473
  %v1504 = vunpack.c.l.b16 %v1474
  %v1505 = vunpack.c.l.b16 %v1475
  %v1506 = vunpack.c.l.b16 %v1476
  %v1507 = vpack.c.b16 %v1496, %v1495
  %v1508 = vpack.c.b16 %v1498, %v1497
  %v1509 = vpack.c.b16 %v1500, %v1499
  %v1510 = vpack.c.b16 %v1502, %v1501
  %v1511 = vpack.c.b16 %v1504, %v1503
  %v1512 = vpack.c.b16 %v1506, %v1505
  %v1520 = vsel %vm1076, %v1482, 0
  %v1523 = vsel %vm1076, %v1481, 0
  %1525 = vmatprep.subr.bf16.mxu0 0
  %1526 = vmatpush1.bf16.msra.mxu0 0
  %1527 = vmatprep.subr.bf16.mxu0 0
  %1528 = vmatpush1.bf16.msra.mxu0 0
  %1529 = vmatprep.subr.bf16.mxu0 0
  %1530 = vmatpush1.bf16.msra.mxu0 %v1512
  %1531 = vmatprep.subr.bf16.mxu0 0
  %1532 = vmatpush1.bf16.msra.mxu0 %v1511
  %1533 = vmatprep.subr.bf16.mxu0 0
  %1534 = vmatpush1.bf16.msra.mxu0 %v1510
  %1535 = vmatprep.subr.bf16.mxu0 0
  %1536 = vmatpush1.bf16.msra.mxu0 %v1509
  %1537 = vmatprep.subr.bf16.mxu0 0
  %1538 = vmatpush1.bf16.msra.mxu0 %v1508
  %1539 = vmatprep.subr.bf16.mxu0 0
  %1540 = vmatpush1.bf16.msra.mxu0 %v1507
  %1541 = vmatprep.subr.bf16.mxu0 0
  %1542 = vmatpush2.bf16.msra.mxu0 0
  %1543 = vmatprep.subr.bf16.mxu0 0
  %1544 = vmatpush2.bf16.msra.mxu0 0
  %1545 = vmatprep.subr.bf16.mxu0 0
  %1546 = vmatpush2.bf16.msra.mxu0 0
  %1547 = vmatprep.subr.bf16.mxu0 0
  %1548 = vmatpush2.bf16.msra.mxu0 0
  %1549 = vmatprep.subr.bf16.mxu0 0
  %1550 = vmatpush2.bf16.msra.mxu0 0
  %1551 = vmatprep.subr.bf16.mxu0 0
  %1552 = vmatpush2.bf16.msra.mxu0 0
  %1553 = vmatprep.subr.bf16.mxu0 0
  %1554 = vmatpush2.bf16.msra.mxu0 0
  %1555 = vmatprep.subr.bf16.mxu0 0
  %1556 = vmatpush2.bf16.msra.mxu0 0
  %1557 = vmatprep.mubr.bf16.mxu0 0
  %1558 = vmatmul.mubr.bf16.gmra.mxu0 %v1520
  %v1559 = vpop.f32.mrf.mxu0
  %v1560 = vadd.f32 0.0, %v1559
  %v1561 = vpop.f32.mrf.mxu0
  %v1562 = vpop.f32.mrf.mxu0
  %v1563 = vadd.f32 0.0, %v1562
  %v1564 = vpop.f32.mrf.mxu0
  %1565 = vmatprep.mubr.bf16.mxu0 0
  %1566 = vmatmul.mubr.bf16.gmra.mxu0 %v1523
  %v1567 = vpop.f32.mrf.mxu0
  %v1568 = vadd.f32 0.0, %v1567
  %v1569 = vpop.f32.mrf.mxu0
  %v1570 = vpop.f32.mrf.mxu0
  %v1571 = vpop.f32.mrf.mxu0
  %1572 = vdwg.mxu0
  %v1573 = vadd.f32 %v1460, %v1560
  %v1574 = vadd.f32 %v1461, %v1563
  %v1575 = vadd.f32 %v1462, %v1568
  %1576 = vst [vmem:[#allocation5] sm:$0xff] %v1573
  %1577 = vst [vmem:[#allocation5 + $0x8] sm:$0xff] %v1574
  %1578 = vst [vmem:[#allocation5 + $0x10] sm:$0xf] %v1575
  %v1579 = vld [vmem:[#allocation5] sm:$0xff]
  %v1580 = vrot.slane %v1579, 4
  %v1581 = vadd.f32 %v1579, %v1580
  %v1582 = vrot.slane %v1581, 2
  %v1583 = vadd.f32 %v1581, %v1582
  %v1584 = vrot.slane %v1583, 1
  %v1585 = vadd.f32 %v1583, %v1584
  %v1586 = vadd.f32 %v1585, 0.0
  %v1587 = vld [vmem:[#allocation5 + $0xc] sm:$0xff]
  %v1588 = vrot.slane %v1587, 4
  %v1589 = vadd.f32 %v1587, %v1588
  %v1590 = vrot.slane %v1589, 2
  %v1591 = vadd.f32 %v1589, %v1590
  %v1592 = vrot.slane %v1591, 1
  %v1593 = vadd.f32 %v1591, %v1592
  %v1594 = vadd.f32 %v1586, %v1593
  %1595 = vrot.lane.b32.xlu0 %v1594, 16
  %v1596 = vpop.permute.xlu0 %1595
  %v1597 = vadd.f32 %v1594, %v1596
  %1598 = vrot.lane.b32.xlu0 %v1597, 32
  %v1599 = vpop.permute.xlu0 %1598
  %v1600 = vadd.f32 %v1597, %v1599
  %1601 = vrot.lane.b32.xlu0 %v1600, 64
  %v1602 = vpop.permute.xlu0 %1601
  %v1603 = vadd.f32 %v1600, %v1602
  %v1604 = vrcp.pop 128.0
  %v1605 = vmul.f32 %v1603, %v1604
  %v1606 = vlaneseq
  %v1607 = vshrl.u32 %v1606, 7
  %v1608 = vsub.s32 0, %v1607
  %v1609 = vrot.slane %v1605, %v1608
  %v1610 = vsub.f32 %v1579, %v1609
  %v1611 = vmul.f32 %v1610, %v1610
  %v1612 = vrot.slane %v1611, 4
  %v1613 = vadd.f32 %v1611, %v1612
  %v1614 = vrot.slane %v1613, 2
  %v1615 = vadd.f32 %v1613, %v1614
  %v1616 = vrot.slane %v1615, 1
  %v1617 = vadd.f32 %v1615, %v1616
  %v1618 = vadd.f32 %v1617, 0.0
  %v1619 = vsub.f32 %v1587, %v1609
  %v1620 = vmul.f32 %v1619, %v1619
  %v1621 = vrot.slane %v1620, 4
  %v1622 = vadd.f32 %v1620, %v1621
  %v1623 = vrot.slane %v1622, 2
  %v1624 = vadd.f32 %v1622, %v1623
  %v1625 = vrot.slane %v1624, 1
  %v1626 = vadd.f32 %v1624, %v1625
  %v1627 = vadd.f32 %v1618, %v1626
  %1628 = vrot.lane.b32.xlu0 %v1627, 16
  %v1629 = vpop.permute.xlu0 %1628
  %v1630 = vadd.f32 %v1627, %v1629
  %1631 = vrot.lane.b32.xlu0 %v1630, 32
  %v1632 = vpop.permute.xlu0 %1631
  %v1633 = vadd.f32 %v1630, %v1632
  %1634 = vrot.lane.b32.xlu0 %v1633, 64
  %v1635 = vpop.permute.xlu0 %1634
  %v1636 = vadd.f32 %v1633, %v1635
  %v1637 = vmul.f32 %v1636, %v1604
  %v1638 = vld [vmem:[%s6] sm:$0x1]
  %v1639 = vadd.f32 %v1637, 1e-05
  %v1640 = vrsqrt.pop %v1639
  %v1641 = vmul.f32 %v1638, %v1640
  %v1642 = vld [vmem:[%s7] sm:$0x1]
  %v1643 = vmul.f32 %v1641, %v1605
  %v1644 = vsub.f32 %v1642, %v1643
  %v1646 = vlaneseq
  %v1647 = vshrl.u32 %v1646, 7
  %v1648 = vsub.s32 0, %v1647
  %v1649 = vrot.slane %v1641, %v1648
  %v1651 = vmul.f32 %v1579, %v1649
  %v1653 = vlaneseq
  %v1654 = vshrl.u32 %v1653, 7
  %v1655 = vsub.s32 0, %v1654
  %v1656 = vrot.slane %v1644, %v1655
  %v1658 = vadd.f32 %v1651, %v1656
  %vm1659 = vcmp.gt.f32.partialorder %v1658, 0.0
  %v1660 = vmul.f32 %v1658, 0.01
  %v1661 = vsel %vm1659, %v1658, %v1660
  %1662 = vst [vmem:[#allocation5] sm:$0xff] %v1661
  %v1663 = vld [vmem:[#allocation5] ss:$2 sm:$0xf]
  %v1664 = vld [vmem:[%s822] ss:$2 sm:$0xf]
  %v1665 = vmax.f32 %v1663, %v1664
  %1666 = vrot.lane.b32.xlu0 %v1665, 112
  %v1667 = vpop.permute.xlu0 %1666
  %v1668 = vmax.f32 %v1665, %v1667
  %v1669 = vld [vmem:[#allocation5 + $0xc] sm:$0xff]
  %v1670 = vmul.f32 %v1669, %v1649
  %v1671 = vadd.f32 %v1670, %v1656
  %vm1672 = vcmp.gt.f32.partialorder %v1671, 0.0
  %v1673 = vmul.f32 %v1671, 0.01
  %v1674 = vsel %vm1672, %v1671, %v1673
  %1675 = vst [vmem:[#allocation5 + $0xc] sm:$0xff] %v1674
  %s1676 = scalar_lea.vmem [#allocation5], 12
  %v1677 = vld [vmem:[%s1676] ss:$2 sm:$0xf]
  %s1678 = scalar_lea.vmem [#allocation5], 13
  %v1679 = vld [vmem:[%s1678] ss:$2 sm:$0xf]
  %v1680 = vmax.f32 %v1677, %v1679
  %1681 = vrot.lane.b32.xlu0 %v1680, 112
  %v1682 = vpop.permute.xlu0 %1681
  %v1683 = vmax.f32 %v1680, %v1682
  %v1685 = vrot.slane %v1683, 4
  %vm1687 = vcmask 1043456
  %v1688 = vsel %vm1687, %v1668, %v1685
  %v1689 = vpack.c.bf16 %v1688, %v1688
  %v1690 = vld [vmem:[%s8] sm:$0xf]
  %v1691 = vld [vmem:[%s8 + $0x4] sm:$0xf]
  %v1692 = vld [vmem:[%s8 + $0x8] sm:$0xf]
  %v1693 = vld [vmem:[%s8 + $0xc] sm:$0xf]
  %v1694 = vld [vmem:[%s8 + $0x10] sm:$0xf]
  %v1695 = vld [vmem:[%s8 + $0x14] sm:$0xf]
  %v1696 = vld [vmem:[%s8 + $0x18] sm:$0xf]
  %v1697 = vld [vmem:[%s8 + $0x1c] sm:$0xf]
  %v1698 = vld [vmem:[%s8 + $0x20] sm:$0xf]
  %v1699 = vld [vmem:[%s8 + $0x24] sm:$0xf]
  %v1700 = vld [vmem:[%s8 + $0x28] sm:$0xf]
  %v1701 = vld [vmem:[%s8 + $0x2c] sm:$0xf]
  %v1702 = vld [vmem:[%s8 + $0x30] sm:$0xf]
  %v1703 = vld [vmem:[%s8 + $0x34] sm:$0xf]
  %v1704 = vld [vmem:[%s8 + $0x38] sm:$0xf]
  %v1705 = vld [vmem:[%s8 + $0x3c] sm:$0xf]
  %v1722 = vunpack.c.l.b16 %v1690
  %v1723 = vunpack.c.l.b16 %v1691
  %v1724 = vunpack.c.l.b16 %v1692
  %v1725 = vunpack.c.l.b16 %v1693
  %v1726 = vunpack.c.l.b16 %v1694
  %v1727 = vunpack.c.l.b16 %v1695
  %v1728 = vunpack.c.l.b16 %v1696
  %v1729 = vunpack.c.l.b16 %v1697
  %v1730 = vunpack.c.l.b16 %v1698
  %v1731 = vunpack.c.l.b16 %v1699
  %v1732 = vunpack.c.l.b16 %v1700
  %v1733 = vunpack.c.l.b16 %v1701
  %v1734 = vunpack.c.l.b16 %v1702
  %v1735 = vunpack.c.l.b16 %v1703
  %v1736 = vunpack.c.l.b16 %v1704
  %v1737 = vunpack.c.l.b16 %v1705
  %v1738 = vpack.c.b16 %v1723, %v1722
  %v1739 = vpack.c.b16 %v1725, %v1724
  %v1740 = vpack.c.b16 %v1727, %v1726
  %v1741 = vpack.c.b16 %v1729, %v1728
  %v1742 = vpack.c.b16 %v1731, %v1730
  %v1743 = vpack.c.b16 %v1733, %v1732
  %v1744 = vpack.c.b16 %v1735, %v1734
  %v1745 = vpack.c.b16 %v1737, %v1736
  %1754 = vmatprep.subr.bf16.mxu0 0
  %1755 = vmatpush1.bf16.msra.mxu0 %v1745
  %1756 = vmatprep.subr.bf16.mxu0 0
  %1757 = vmatpush1.bf16.msra.mxu0 %v1744
  %1758 = vmatprep.subr.bf16.mxu0 0
  %1759 = vmatpush1.bf16.msra.mxu0 %v1743
  %1760 = vmatprep.subr.bf16.mxu0 0
  %1761 = vmatpush1.bf16.msra.mxu0 %v1742
  %1762 = vmatprep.subr.bf16.mxu0 0
  %1763 = vmatpush1.bf16.msra.mxu0 %v1741
  %1764 = vmatprep.subr.bf16.mxu0 0
  %1765 = vmatpush1.bf16.msra.mxu0 %v1740
  %1766 = vmatprep.subr.bf16.mxu0 0
  %1767 = vmatpush1.bf16.msra.mxu0 %v1739
  %1768 = vmatprep.subr.bf16.mxu0 0
  %1769 = vmatpush1.bf16.msra.mxu0 %v1738
  %1770 = vmatprep.subr.bf16.mxu0 0
  %1771 = vmatpush2.bf16.msra.mxu0 0
  %1772 = vmatprep.subr.bf16.mxu0 0
  %1773 = vmatpush2.bf16.msra.mxu0 0
  %1774 = vmatprep.subr.bf16.mxu0 0
  %1775 = vmatpush2.bf16.msra.mxu0 0
  %1776 = vmatprep.subr.bf16.mxu0 0
  %1777 = vmatpush2.bf16.msra.mxu0 0
  %1778 = vmatprep.subr.bf16.mxu0 0
  %1779 = vmatpush2.bf16.msra.mxu0 0
  %1780 = vmatprep.subr.bf16.mxu0 0
  %1781 = vmatpush2.bf16.msra.mxu0 0
  %1782 = vmatprep.subr.bf16.mxu0 0
  %1783 = vmatpush2.bf16.msra.mxu0 0
  %1784 = vmatprep.subr.bf16.mxu0 0
  %1785 = vmatpush2.bf16.msra.mxu0 0
  %1786 = vmatprep.mubr.bf16.mxu0 0
  %1787 = vmatmul.mubr.bf16.gmra.mxu0 %v1689
  %v1788 = vpop.f32.mrf.mxu0
  %v1789 = vadd.f32 0.0, %v1788
  %v1790 = vpop.f32.mrf.mxu0
  %v1791 = vpop.f32.mrf.mxu0
  %v1792 = vpop.f32.mrf.mxu0
  %1793 = vdwg.mxu0
  %v1794 = vpack.c.bf16 %v1789, %v1789
  %v1796 = vunpack.c.l.b16 %v1794
  %v1797 = vpack.c.b16 %v1796, %v1796
  %v1798 = vrot.slane %v1797, 7
  %1799 = vrot.lane.b32.xlu0 %v1798, 32
  %v1800 = vpop.permute.xlu0 %1799
  %vm1802 = vcmask 780545
  %1803 = vst.msk [vmem:[#allocation4] sm:$0x6] %vm1802, %v1800
  %v1804 = vrot.slane %v1797, 5
  %v1805 = vrot.slane %v1804, 4
  %1806 = vrot.lane.b32.xlu0 %v1805, 32
  %v1807 = vpop.permute.xlu0 %1806
  %1809 = vst.msk [vmem:[#allocation4 + $0x4] sm:$0x6] %vm1802, %v1807
  %v1810 = vld [vmem:[#allocation4] sm:$0xf]
  %v1811 = vld [vmem:[#allocation4 + $0x4] sm:$0x3]
  %v1812 = vld [vmem:[%s9] sm:$0xf]
  %v1813 = vld [vmem:[%s9 + $0x4] sm:$0xf]
  %v1814 = vld [vmem:[%s9 + $0x8] sm:$0xf]
  %v1815 = vld [vmem:[%s9 + $0xc] sm:$0xf]
  %v1816 = vld [vmem:[%s9 + $0x10] sm:$0xf]
  %v1817 = vld [vmem:[%s9 + $0x14] sm:$0xf]
  %v1818 = vld [vmem:[%s9 + $0x18] sm:$0xf]
  %v1819 = vld [vmem:[%s9 + $0x1c] sm:$0xf]
  %v1820 = vld [vmem:[%s9 + $0x20] sm:$0xf]
  %v1821 = vld [vmem:[%s9 + $0x24] sm:$0xf]
  %v1822 = vld [vmem:[%s9 + $0x28] sm:$0xf]
  %v1823 = vld [vmem:[%s9 + $0x2c] sm:$0xf]
  %v1824 = vld [vmem:[%s9 + $0x30] sm:$0xf]
  %v1825 = vld [vmem:[%s9 + $0x34] sm:$0xf]
  %v1826 = vld [vmem:[%s9 + $0x38] sm:$0xf]
  %v1827 = vld [vmem:[%s9 + $0x3c] sm:$0xf]
  %v1828 = vld [vmem:[#allocation4 + $0x4] sm:$0x7]
  %s1829 = scalar_lea.vmem %s9, 64
  %v1830 = vld [vmem:[%s1829] sm:$0xf]
  %v1831 = vld [vmem:[%s1829 + $0x4] sm:$0xf]
  %v1832 = vld [vmem:[%s1829 + $0x8] sm:$0xf]
  %v1833 = vld [vmem:[%s1829 + $0xc] sm:$0xf]
  %v1834 = vld [vmem:[%s1829 + $0x10] sm:$0xf]
  %v1835 = vld [vmem:[%s1829 + $0x14] sm:$0xf]
  %v1836 = vld [vmem:[%s1829 + $0x18] sm:$0xf]
  %v1837 = vld [vmem:[%s1829 + $0x1c] sm:$0xf]
  %v1838 = vld [vmem:[%s1829 + $0x20] sm:$0xf]
  %v1839 = vld [vmem:[%s1829 + $0x24] sm:$0xf]
  %v1840 = vld [vmem:[%s1829 + $0x28] sm:$0xf]
  %v1841 = vld [vmem:[%s1829 + $0x2c] sm:$0xf]
  %v1842 = vld [vmem:[%s1829 + $0x30] sm:$0xf]
  %v1843 = vld [vmem:[%s1829 + $0x34] sm:$0xf]
  %v1844 = vld [vmem:[%s1829 + $0x38] sm:$0xf]
  %v1845 = vld [vmem:[%s1829 + $0x3c] sm:$0xf]
  %v1848 = vunpack.c.l.b16 %v1810
  %v1849 = vunpack.c.l.b16 %v1828
  %v1850 = vpack.c.b16 %v1849, %v1848
  %v1852 = vshrl.u32 %v1850, 16
  %v1854 = vshll.u32 %v1850, 16
  %v1856 = vrot.slane %v1854, 1
  %v1857 = vor.u32 %v1852, %v1856
  %v1875 = vunpack.c.l.b16 %v1830
  %v1876 = vunpack.c.l.b16 %v1831
  %v1877 = vunpack.c.l.b16 %v1832
  %v1878 = vunpack.c.l.b16 %v1833
  %v1879 = vunpack.c.l.b16 %v1834
  %v1880 = vunpack.c.l.b16 %v1835
  %v1881 = vunpack.c.l.b16 %v1836
  %v1882 = vunpack.c.l.b16 %v1837
  %v1883 = vunpack.c.l.b16 %v1838
  %v1884 = vunpack.c.l.b16 %v1839
  %v1885 = vunpack.c.l.b16 %v1840
  %v1886 = vunpack.c.l.b16 %v1841
  %v1887 = vunpack.c.l.b16 %v1842
  %v1888 = vunpack.c.l.b16 %v1843
  %v1889 = vunpack.c.l.b16 %v1844
  %v1890 = vunpack.c.l.b16 %v1845
  %v1891 = vpack.c.b16 %v1876, %v1875
  %v1892 = vpack.c.b16 %v1878, %v1877
  %v1893 = vpack.c.b16 %v1880, %v1879
  %v1894 = vpack.c.b16 %v1882, %v1881
  %v1895 = vpack.c.b16 %v1884, %v1883
  %v1896 = vpack.c.b16 %v1886, %v1885
  %v1897 = vpack.c.b16 %v1888, %v1887
  %v1898 = vpack.c.b16 %v1890, %v1889
  %1907 = vmatprep.subr.bf16.mxu0 0
  %1908 = vmatpush1.bf16.msra.mxu0 %v1898
  %1909 = vmatprep.subr.bf16.mxu0 0
  %1910 = vmatpush1.bf16.msra.mxu0 %v1897
  %1911 = vmatprep.subr.bf16.mxu0 0
  %1912 = vmatpush1.bf16.msra.mxu0 %v1896
  %1913 = vmatprep.subr.bf16.mxu0 0
  %1914 = vmatpush1.bf16.msra.mxu0 %v1895
  %1915 = vmatprep.subr.bf16.mxu0 0
  %1916 = vmatpush1.bf16.msra.mxu0 %v1894
  %1917 = vmatprep.subr.bf16.mxu0 0
  %1918 = vmatpush1.bf16.msra.mxu0 %v1893
  %1919 = vmatprep.subr.bf16.mxu0 0
  %1920 = vmatpush1.bf16.msra.mxu0 %v1892
  %1921 = vmatprep.subr.bf16.mxu0 0
  %1922 = vmatpush1.bf16.msra.mxu0 %v1891
  %1923 = vmatprep.subr.bf16.mxu0 0
  %1924 = vmatpush2.bf16.msra.mxu0 0
  %1925 = vmatprep.subr.bf16.mxu0 0
  %1926 = vmatpush2.bf16.msra.mxu0 0
  %1927 = vmatprep.subr.bf16.mxu0 0
  %1928 = vmatpush2.bf16.msra.mxu0 0
  %1929 = vmatprep.subr.bf16.mxu0 0
  %1930 = vmatpush2.bf16.msra.mxu0 0
  %1931 = vmatprep.subr.bf16.mxu0 0
  %1932 = vmatpush2.bf16.msra.mxu0 0
  %1933 = vmatprep.subr.bf16.mxu0 0
  %1934 = vmatpush2.bf16.msra.mxu0 0
  %1935 = vmatprep.subr.bf16.mxu0 0
  %1936 = vmatpush2.bf16.msra.mxu0 0
  %1937 = vmatprep.subr.bf16.mxu0 0
  %1938 = vmatpush2.bf16.msra.mxu0 0
  %1939 = vmatprep.mubr.bf16.mxu0 0
  %1940 = vmatmul.mubr.bf16.gmra.mxu0 %v1857
  %v1941 = vpop.f32.mrf.mxu0
  %v1942 = vadd.f32 0.0, %v1941
  %v1943 = vpop.f32.mrf.mxu0
  %v1944 = vpop.f32.mrf.mxu0
  %v1945 = vadd.f32 0.0, %v1944
  %v1946 = vpop.f32.mrf.mxu0
  %1947 = vdwg.mxu0
  %v1949 = vunpack.c.l.b16 %v1811
  %v1950 = vpack.c.b16 %v1949, %v1848
  %v1968 = vunpack.c.l.b16 %v1812
  %v1969 = vunpack.c.l.b16 %v1813
  %v1970 = vunpack.c.l.b16 %v1814
  %v1971 = vunpack.c.l.b16 %v1815
  %v1972 = vunpack.c.l.b16 %v1816
  %v1973 = vunpack.c.l.b16 %v1817
  %v1974 = vunpack.c.l.b16 %v1818
  %v1975 = vunpack.c.l.b16 %v1819
  %v1976 = vunpack.c.l.b16 %v1820
  %v1977 = vunpack.c.l.b16 %v1821
  %v1978 = vunpack.c.l.b16 %v1822
  %v1979 = vunpack.c.l.b16 %v1823
  %v1980 = vunpack.c.l.b16 %v1824
  %v1981 = vunpack.c.l.b16 %v1825
  %v1982 = vunpack.c.l.b16 %v1826
  %v1983 = vunpack.c.l.b16 %v1827
  %v1984 = vpack.c.b16 %v1969, %v1968
  %v1985 = vpack.c.b16 %v1971, %v1970
  %v1986 = vpack.c.b16 %v1973, %v1972
  %v1987 = vpack.c.b16 %v1975, %v1974
  %v1988 = vpack.c.b16 %v1977, %v1976
  %v1989 = vpack.c.b16 %v1979, %v1978
  %v1990 = vpack.c.b16 %v1981, %v1980
  %v1991 = vpack.c.b16 %v1983, %v1982
  %2000 = vmatprep.subr.bf16.mxu0 0
  %2001 = vmatpush1.bf16.msra.mxu0 %v1991
  %2002 = vmatprep.subr.bf16.mxu0 0
  %2003 = vmatpush1.bf16.msra.mxu0 %v1990
  %2004 = vmatprep.subr.bf16.mxu0 0
  %2005 = vmatpush1.bf16.msra.mxu0 %v1989
  %2006 = vmatprep.subr.bf16.mxu0 0
  %2007 = vmatpush1.bf16.msra.mxu0 %v1988
  %2008 = vmatprep.subr.bf16.mxu0 0
  %2009 = vmatpush1.bf16.msra.mxu0 %v1987
  %2010 = vmatprep.subr.bf16.mxu0 0
  %2011 = vmatpush1.bf16.msra.mxu0 %v1986
  %2012 = vmatprep.subr.bf16.mxu0 0
  %2013 = vmatpush1.bf16.msra.mxu0 %v1985
  %2014 = vmatprep.subr.bf16.mxu0 0
  %2015 = vmatpush1.bf16.msra.mxu0 %v1984
  %2016 = vmatprep.subr.bf16.mxu0 0
  %2017 = vmatpush2.bf16.msra.mxu0 0
  %2018 = vmatprep.subr.bf16.mxu0 0
  %2019 = vmatpush2.bf16.msra.mxu0 0
  %2020 = vmatprep.subr.bf16.mxu0 0
  %2021 = vmatpush2.bf16.msra.mxu0 0
  %2022 = vmatprep.subr.bf16.mxu0 0
  %2023 = vmatpush2.bf16.msra.mxu0 0
  %2024 = vmatprep.subr.bf16.mxu0 0
  %2025 = vmatpush2.bf16.msra.mxu0 0
  %2026 = vmatprep.subr.bf16.mxu0 0
  %2027 = vmatpush2.bf16.msra.mxu0 0
  %2028 = vmatprep.subr.bf16.mxu0 0
  %2029 = vmatpush2.bf16.msra.mxu0 0
  %2030 = vmatprep.subr.bf16.mxu0 0
  %2031 = vmatpush2.bf16.msra.mxu0 0
  %2032 = vmatprep.mubr.bf16.mxu0 0
  %2033 = vmatmul.mubr.bf16.gmra.mxu0 %v1950
  %v2034 = vpop.f32.mrf.mxu0
  %v2035 = vadd.f32 %v1942, %v2034
  %v2036 = vpop.f32.mrf.mxu0
  %v2037 = vpop.f32.mrf.mxu0
  %v2038 = vadd.f32 %v1945, %v2037
  %v2039 = vpop.f32.mrf.mxu0
  %2040 = vdwg.mxu0
  %v2041 = vld [vmem:[#allocation4] sm:$0xe]
  %s2042 = scalar_lea.vmem %s9, 128
  %v2043 = vld [vmem:[%s2042] sm:$0xf]
  %v2044 = vld [vmem:[%s2042 + $0x4] sm:$0xf]
  %v2045 = vld [vmem:[%s2042 + $0x8] sm:$0xf]
  %v2046 = vld [vmem:[%s2042 + $0xc] sm:$0xf]
  %v2047 = vld [vmem:[%s2042 + $0x10] sm:$0xf]
  %v2048 = vld [vmem:[%s2042 + $0x14] sm:$0xf]
  %v2049 = vld [vmem:[%s2042 + $0x18] sm:$0xf]
  %v2050 = vld [vmem:[%s2042 + $0x1c] sm:$0xf]
  %v2051 = vld [vmem:[%s2042 + $0x20] sm:$0xf]
  %v2052 = vld [vmem:[%s2042 + $0x24] sm:$0xf]
  %v2053 = vld [vmem:[%s2042 + $0x28] sm:$0xf]
  %v2054 = vld [vmem:[%s2042 + $0x2c] sm:$0xf]
  %v2055 = vld [vmem:[%s2042 + $0x30] sm:$0xf]
  %v2056 = vld [vmem:[%s2042 + $0x34] sm:$0xf]
  %v2057 = vld [vmem:[%s2042 + $0x38] sm:$0xf]
  %v2058 = vld [vmem:[%s2042 + $0x3c] sm:$0xf]
  %v2060 = vunpack.c.l.b16 %v2041
  %v2061 = vpack.c.b16 %v1849, %v2060
  %v2062 = vrot.slane %v2061, 1
  %v2080 = vunpack.c.l.b16 %v2043
  %v2081 = vunpack.c.l.b16 %v2044
  %v2082 = vunpack.c.l.b16 %v2045
  %v2083 = vunpack.c.l.b16 %v2046
  %v2084 = vunpack.c.l.b16 %v2047
  %v2085 = vunpack.c.l.b16 %v2048
  %v2086 = vunpack.c.l.b16 %v2049
  %v2087 = vunpack.c.l.b16 %v2050
  %v2088 = vunpack.c.l.b16 %v2051
  %v2089 = vunpack.c.l.b16 %v2052
  %v2090 = vunpack.c.l.b16 %v2053
  %v2091 = vunpack.c.l.b16 %v2054
  %v2092 = vunpack.c.l.b16 %v2055
  %v2093 = vunpack.c.l.b16 %v2056
  %v2094 = vunpack.c.l.b16 %v2057
  %v2095 = vunpack.c.l.b16 %v2058
  %v2096 = vpack.c.b16 %v2081, %v2080
  %v2097 = vpack.c.b16 %v2083, %v2082
  %v2098 = vpack.c.b16 %v2085, %v2084
  %v2099 = vpack.c.b16 %v2087, %v2086
  %v2100 = vpack.c.b16 %v2089, %v2088
  %v2101 = vpack.c.b16 %v2091, %v2090
  %v2102 = vpack.c.b16 %v2093, %v2092
  %v2103 = vpack.c.b16 %v2095, %v2094
  %2112 = vmatprep.subr.bf16.mxu0 0
  %2113 = vmatpush1.bf16.msra.mxu0 %v2103
  %2114 = vmatprep.subr.bf16.mxu0 0
  %2115 = vmatpush1.bf16.msra.mxu0 %v2102
  %2116 = vmatprep.subr.bf16.mxu0 0
  %2117 = vmatpush1.bf16.msra.mxu0 %v2101
  %2118 = vmatprep.subr.bf16.mxu0 0
  %2119 = vmatpush1.bf16.msra.mxu0 %v2100
  %2120 = vmatprep.subr.bf16.mxu0 0
  %2121 = vmatpush1.bf16.msra.mxu0 %v2099
  %2122 = vmatprep.subr.bf16.mxu0 0
  %2123 = vmatpush1.bf16.msra.mxu0 %v2098
  %2124 = vmatprep.subr.bf16.mxu0 0
  %2125 = vmatpush1.bf16.msra.mxu0 %v2097
  %2126 = vmatprep.subr.bf16.mxu0 0
  %2127 = vmatpush1.bf16.msra.mxu0 %v2096
  %2128 = vmatprep.subr.bf16.mxu0 0
  %2129 = vmatpush2.bf16.msra.mxu0 0
  %2130 = vmatprep.subr.bf16.mxu0 0
  %2131 = vmatpush2.bf16.msra.mxu0 0
  %2132 = vmatprep.subr.bf16.mxu0 0
  %2133 = vmatpush2.bf16.msra.mxu0 0
  %2134 = vmatprep.subr.bf16.mxu0 0
  %2135 = vmatpush2.bf16.msra.mxu0 0
  %2136 = vmatprep.subr.bf16.mxu0 0
  %2137 = vmatpush2.bf16.msra.mxu0 0
  %2138 = vmatprep.subr.bf16.mxu0 0
  %2139 = vmatpush2.bf16.msra.mxu0 0
  %2140 = vmatprep.subr.bf16.mxu0 0
  %2141 = vmatpush2.bf16.msra.mxu0 0
  %2142 = vmatprep.subr.bf16.mxu0 0
  %2143 = vmatpush2.bf16.msra.mxu0 0
  %2144 = vmatprep.mubr.bf16.mxu0 0
  %2145 = vmatmul.mubr.bf16.gmra.mxu0 %v2062
  %v2146 = vpop.f32.mrf.mxu0
  %v2147 = vadd.f32 0.0, %v2146
  %v2148 = vpop.f32.mrf.mxu0
  %v2149 = vpop.f32.mrf.mxu0
  %v2150 = vadd.f32 0.0, %v2149
  %v2151 = vpop.f32.mrf.mxu0
  %2152 = vdwg.mxu0
  %v2153 = vadd.f32 %v2035, %v2147
  %v2154 = vadd.f32 %v2038, %v2150
  %v2155 = vld [vmem:[#allocation4 + $0x4] sm:$0xf]
  %s2156 = scalar_lea.vmem %s9, 192
  %v2157 = vld [vmem:[%s2156] sm:$0xf]
  %v2158 = vld [vmem:[%s2156 + $0x4] sm:$0xf]
  %v2159 = vld [vmem:[%s2156 + $0x8] sm:$0xf]
  %v2160 = vld [vmem:[%s2156 + $0xc] sm:$0xf]
  %v2161 = vld [vmem:[%s2156 + $0x10] sm:$0xf]
  %v2162 = vld [vmem:[%s2156 + $0x14] sm:$0xf]
  %v2163 = vld [vmem:[%s2156 + $0x18] sm:$0xf]
  %v2164 = vld [vmem:[%s2156 + $0x1c] sm:$0xf]
  %v2165 = vld [vmem:[%s2156 + $0x20] sm:$0xf]
  %v2166 = vld [vmem:[%s2156 + $0x24] sm:$0xf]
  %v2167 = vld [vmem:[%s2156 + $0x28] sm:$0xf]
  %v2168 = vld [vmem:[%s2156 + $0x2c] sm:$0xf]
  %v2169 = vld [vmem:[%s2156 + $0x30] sm:$0xf]
  %v2170 = vld [vmem:[%s2156 + $0x34] sm:$0xf]
  %v2171 = vld [vmem:[%s2156 + $0x38] sm:$0xf]
  %v2172 = vld [vmem:[%s2156 + $0x3c] sm:$0xf]
  %v2174 = vunpack.c.l.b16 %v2155
  %v2175 = vpack.c.b16 %v2174, %v2060
  %v2177 = vshrl.u32 %v2175, 16
  %v2179 = vrot.slane %v2177, 1
  %v2180 = vshll.u32 %v2175, 16
  %v2182 = vrot.slane %v2180, 2
  %v2183 = vor.u32 %v2179, %v2182
  %v2201 = vunpack.c.l.b16 %v2157
  %v2202 = vunpack.c.l.b16 %v2158
  %v2203 = vunpack.c.l.b16 %v2159
  %v2204 = vunpack.c.l.b16 %v2160
  %v2205 = vunpack.c.l.b16 %v2161
  %v2206 = vunpack.c.l.b16 %v2162
  %v2207 = vunpack.c.l.b16 %v2163
  %v2208 = vunpack.c.l.b16 %v2164
  %v2209 = vunpack.c.l.b16 %v2165
  %v2210 = vunpack.c.l.b16 %v2166
  %v2211 = vunpack.c.l.b16 %v2167
  %v2212 = vunpack.c.l.b16 %v2168
  %v2213 = vunpack.c.l.b16 %v2169
  %v2214 = vunpack.c.l.b16 %v2170
  %v2215 = vunpack.c.l.b16 %v2171
  %v2216 = vunpack.c.l.b16 %v2172
  %v2217 = vpack.c.b16 %v2202, %v2201
  %v2218 = vpack.c.b16 %v2204, %v2203
  %v2219 = vpack.c.b16 %v2206, %v2205
  %v2220 = vpack.c.b16 %v2208, %v2207
  %v2221 = vpack.c.b16 %v2210, %v2209
  %v2222 = vpack.c.b16 %v2212, %v2211
  %v2223 = vpack.c.b16 %v2214, %v2213
  %v2224 = vpack.c.b16 %v2216, %v2215
  %2233 = vmatprep.subr.bf16.mxu0 0
  %2234 = vmatpush1.bf16.msra.mxu0 %v2224
  %2235 = vmatprep.subr.bf16.mxu0 0
  %2236 = vmatpush1.bf16.msra.mxu0 %v2223
  %2237 = vmatprep.subr.bf16.mxu0 0
  %2238 = vmatpush1.bf16.msra.mxu0 %v2222
  %2239 = vmatprep.subr.bf16.mxu0 0
  %2240 = vmatpush1.bf16.msra.mxu0 %v2221
  %2241 = vmatprep.subr.bf16.mxu0 0
  %2242 = vmatpush1.bf16.msra.mxu0 %v2220
  %2243 = vmatprep.subr.bf16.mxu0 0
  %2244 = vmatpush1.bf16.msra.mxu0 %v2219
  %2245 = vmatprep.subr.bf16.mxu0 0
  %2246 = vmatpush1.bf16.msra.mxu0 %v2218
  %2247 = vmatprep.subr.bf16.mxu0 0
  %2248 = vmatpush1.bf16.msra.mxu0 %v2217
  %2249 = vmatprep.subr.bf16.mxu0 0
  %2250 = vmatpush2.bf16.msra.mxu0 0
  %2251 = vmatprep.subr.bf16.mxu0 0
  %2252 = vmatpush2.bf16.msra.mxu0 0
  %2253 = vmatprep.subr.bf16.mxu0 0
  %2254 = vmatpush2.bf16.msra.mxu0 0
  %2255 = vmatprep.subr.bf16.mxu0 0
  %2256 = vmatpush2.bf16.msra.mxu0 0
  %2257 = vmatprep.subr.bf16.mxu0 0
  %2258 = vmatpush2.bf16.msra.mxu0 0
  %2259 = vmatprep.subr.bf16.mxu0 0
  %2260 = vmatpush2.bf16.msra.mxu0 0
  %2261 = vmatprep.subr.bf16.mxu0 0
  %2262 = vmatpush2.bf16.msra.mxu0 0
  %2263 = vmatprep.subr.bf16.mxu0 0
  %2264 = vmatpush2.bf16.msra.mxu0 0
  %2265 = vmatprep.mubr.bf16.mxu0 0
  %2266 = vmatmul.mubr.bf16.gmra.mxu0 %v2183
  %v2267 = vpop.f32.mrf.mxu0
  %v2268 = vadd.f32 0.0, %v2267
  %v2269 = vpop.f32.mrf.mxu0
  %v2270 = vpop.f32.mrf.mxu0
  %v2271 = vadd.f32 0.0, %v2270
  %v2272 = vpop.f32.mrf.mxu0
  %2273 = vdwg.mxu0
  %v2274 = vadd.f32 %v2153, %v2268
  %v2275 = vadd.f32 %v2154, %v2271
  %v2276 = vld [vmem:[#allocation4] sm:$0xc]
  %s2277 = scalar_lea.vmem %s9, 256
  %v2278 = vld [vmem:[%s2277] sm:$0xf]
  %v2279 = vld [vmem:[%s2277 + $0x4] sm:$0xf]
  %v2280 = vld [vmem:[%s2277 + $0x8] sm:$0xf]
  %v2281 = vld [vmem:[%s2277 + $0xc] sm:$0xf]
  %v2282 = vld [vmem:[%s2277 + $0x10] sm:$0xf]
  %v2283 = vld [vmem:[%s2277 + $0x14] sm:$0xf]
  %v2284 = vld [vmem:[%s2277 + $0x18] sm:$0xf]
  %v2285 = vld [vmem:[%s2277 + $0x1c] sm:$0xf]
  %v2286 = vld [vmem:[%s2277 + $0x20] sm:$0xf]
  %v2287 = vld [vmem:[%s2277 + $0x24] sm:$0xf]
  %v2288 = vld [vmem:[%s2277 + $0x28] sm:$0xf]
  %v2289 = vld [vmem:[%s2277 + $0x2c] sm:$0xf]
  %v2290 = vld [vmem:[%s2277 + $0x30] sm:$0xf]
  %v2291 = vld [vmem:[%s2277 + $0x34] sm:$0xf]
  %v2292 = vld [vmem:[%s2277 + $0x38] sm:$0xf]
  %v2293 = vld [vmem:[%s2277 + $0x3c] sm:$0xf]
  %v2295 = vunpack.c.l.b16 %v2276
  %v2296 = vpack.c.b16 %v2174, %v2295
  %v2297 = vrot.slane %v2296, 2
  %v2315 = vunpack.c.l.b16 %v2278
  %v2316 = vunpack.c.l.b16 %v2279
  %v2317 = vunpack.c.l.b16 %v2280
  %v2318 = vunpack.c.l.b16 %v2281
  %v2319 = vunpack.c.l.b16 %v2282
  %v2320 = vunpack.c.l.b16 %v2283
  %v2321 = vunpack.c.l.b16 %v2284
  %v2322 = vunpack.c.l.b16 %v2285
  %v2323 = vunpack.c.l.b16 %v2286
  %v2324 = vunpack.c.l.b16 %v2287
  %v2325 = vunpack.c.l.b16 %v2288
  %v2326 = vunpack.c.l.b16 %v2289
  %v2327 = vunpack.c.l.b16 %v2290
  %v2328 = vunpack.c.l.b16 %v2291
  %v2329 = vunpack.c.l.b16 %v2292
  %v2330 = vunpack.c.l.b16 %v2293
  %v2331 = vpack.c.b16 %v2316, %v2315
  %v2332 = vpack.c.b16 %v2318, %v2317
  %v2333 = vpack.c.b16 %v2320, %v2319
  %v2334 = vpack.c.b16 %v2322, %v2321
  %v2335 = vpack.c.b16 %v2324, %v2323
  %v2336 = vpack.c.b16 %v2326, %v2325
  %v2337 = vpack.c.b16 %v2328, %v2327
  %v2338 = vpack.c.b16 %v2330, %v2329
  %2347 = vmatprep.subr.bf16.mxu0 0
  %2348 = vmatpush1.bf16.msra.mxu0 %v2338
  %2349 = vmatprep.subr.bf16.mxu0 0
  %2350 = vmatpush1.bf16.msra.mxu0 %v2337
  %2351 = vmatprep.subr.bf16.mxu0 0
  %2352 = vmatpush1.bf16.msra.mxu0 %v2336
  %2353 = vmatprep.subr.bf16.mxu0 0
  %2354 = vmatpush1.bf16.msra.mxu0 %v2335
  %2355 = vmatprep.subr.bf16.mxu0 0
  %2356 = vmatpush1.bf16.msra.mxu0 %v2334
  %2357 = vmatprep.subr.bf16.mxu0 0
  %2358 = vmatpush1.bf16.msra.mxu0 %v2333
  %2359 = vmatprep.subr.bf16.mxu0 0
  %2360 = vmatpush1.bf16.msra.mxu0 %v2332
  %2361 = vmatprep.subr.bf16.mxu0 0
  %2362 = vmatpush1.bf16.msra.mxu0 %v2331
  %2363 = vmatprep.subr.bf16.mxu0 0
  %2364 = vmatpush2.bf16.msra.mxu0 0
  %2365 = vmatprep.subr.bf16.mxu0 0
  %2366 = vmatpush2.bf16.msra.mxu0 0
  %2367 = vmatprep.subr.bf16.mxu0 0
  %2368 = vmatpush2.bf16.msra.mxu0 0
  %2369 = vmatprep.subr.bf16.mxu0 0
  %2370 = vmatpush2.bf16.msra.mxu0 0
  %2371 = vmatprep.subr.bf16.mxu0 0
  %2372 = vmatpush2.bf16.msra.mxu0 0
  %2373 = vmatprep.subr.bf16.mxu0 0
  %2374 = vmatpush2.bf16.msra.mxu0 0
  %2375 = vmatprep.subr.bf16.mxu0 0
  %2376 = vmatpush2.bf16.msra.mxu0 0
  %2377 = vmatprep.subr.bf16.mxu0 0
  %2378 = vmatpush2.bf16.msra.mxu0 0
  %2379 = vmatprep.mubr.bf16.mxu0 0
  %2380 = vmatmul.mubr.bf16.gmra.mxu0 %v2297
  %v2381 = vpop.f32.mrf.mxu0
  %v2382 = vadd.f32 0.0, %v2381
  %v2383 = vpop.f32.mrf.mxu0
  %v2384 = vpop.f32.mrf.mxu0
  %v2385 = vadd.f32 0.0, %v2384
  %v2386 = vpop.f32.mrf.mxu0
  %2387 = vdwg.mxu0
  %v2388 = vadd.f32 %v2274, %v2382
  %v2389 = vadd.f32 %v2275, %v2385
  %v2390 = vld [vmem:[%s10] sm:$0x1]
  %v2392 = vlaneseq
  %v2393 = vshrl.u32 %v2392, 7
  %v2394 = vsub.s32 0, %v2393
  %v2395 = vrot.slane %v2390, %v2394
  %v2397 = vadd.f32 %v2388, %v2395
  %v2398 = vadd.f32 %v2389, %v2395
  %v2399 = vsub.f32 0.0, %v2397
  %v2400 = vsub.f32 0.0, %v2398
  %v2401 = vmul.f32 %v2399, 1.442695
  %v2402 = vpow.pop %v2401
  %v2403 = vmul.f32 %v2400, 1.442695
  %v2404 = vpow.pop %v2403
  %v2405 = vadd.f32 %v2402, 1.0
  %v2406 = vadd.f32 %v2404, 1.0
  %v2407 = vrcp.pop %v2405
  %v2408 = vmul.f32 1.0, %v2407
  %v2409 = vrcp.pop %v2406
  %v2410 = vmul.f32 1.0, %v2409
  %vm2411 = vcmask 130048
  %2412 = vst.msk [vmem:[%s11] sm:$0xff] %vm2411, %v2408
  %vm2413 = vcmask 125952
  %2414 = vst.msk [vmem:[%s11 + $0x8] sm:$0xf] %vm2413, %v2410
  // Predicated region
  $region46: #{encoder_forward.1} parent=0 // pred_check
    _
  $region47: #{encoder_forward.1} parent=0 // pred_check_branch
    %2416 = sbr.rel (0) target = $region49
  $region48: #{encoder_forward.1} parent=0 // pred_region
    _
  $region49: #{encoder_forward.1} parent=0 // pred_fallthru
    _
  // Predicated region
  $region50: #{encoder_forward.1} parent=0 // pred_check
    _
  $region51: #{encoder_forward.1} parent=0 // pred_check_branch
    %2418 = sbr.rel (0) target = $region53
  $region52: #{encoder_forward.1} parent=0 // pred_region
    _
  $region53: #{encoder_forward.1} parent=0 // pred_fallthru
    _

</llo_original>
